<compile_context>
chip_gen: v7x
topology: tpu7x:2x2x1
jax: 0.10.0
libtpu: 0.0.40
codegen_flags: <defaults>
</compile_context>

<pallas_src>
import math
import functools

import numpy as np
import jax
import jax.numpy as jnp
from jax import lax
from jax.experimental import pallas as pl
from jax.experimental.pallas import tpu as pltpu

MASK_VAL = -1000000000.0  # float32 branch of the PyTorch module


# ------------------------- RoPE constant precompute -------------------------


def rotary_caches(rope_dim, max_seq_length, base=10000.0):
    inv_freq = 1.0 / base ** (jnp.arange(0, rope_dim, 2, dtype=jnp.float32) / rope_dim)
    positions = jnp.arange(max_seq_length, dtype=jnp.float32)
    freqs = jnp.einsum("i,j->ij", positions, inv_freq)
    return jnp.cos(freqs), jnp.sin(freqs)  # (S, rope_dim // 2) each


def build_rope_constants(num_heads, head_dim, rope_dim, max_seq_length):
    """Spread the (S, rope_dim/2) cos/sin caches over the (S, H*D) lane layout.

    With these tables, interleaved RoPE on a (T, H*D) tile is just
        x*cos_full + roll(x, -1, -1)*sin_even + roll(x, +1, -1)*sin_odd
    (cos_full = 1 and sin_* = 0 on the non-rotated dims, so they pass through;
    sin_* is also 0 at head boundaries so the roll wrap-around never leaks
    across heads).
    """
    hd = num_heads * head_dim
    cos_full = np.ones((max_seq_length, hd), np.float32)
    sin_even = np.zeros((max_seq_length, hd), np.float32)
    sin_odd = np.zeros((max_seq_length, hd), np.float32)
    if rope_dim > 0:
        cos_c, sin_c = rotary_caches(rope_dim, max_seq_length)
        cos_np, sin_np = np.asarray(cos_c), np.asarray(sin_c)
        for h in range(num_heads):
            lo = h * head_dim
            cos_full[:, lo:lo + rope_dim:2] = cos_np
            cos_full[:, lo + 1:lo + rope_dim:2] = cos_np
            sin_even[:, lo:lo + rope_dim:2] = -sin_np
            sin_odd[:, lo + 1:lo + rope_dim:2] = sin_np
    return jnp.asarray(cos_full), jnp.asarray(sin_even), jnp.asarray(sin_odd)


# ------------------------------ fused kernel --------------------------------


def _fused_self_attention_kernel(x_ref, wqkv_ref, bqkv_ref, cos_ref,
                                 sin_e_ref, sin_o_ref, glob_ref,
                                 wout_ref, bout_ref, o_ref,
                                 *, batch, seq_len, num_heads, head_dim, scale):
    B, T = batch, seq_len
    hd = num_heads * head_dim
    hidden_in = x_ref.shape[-1]

    # --- qkv projection for ALL B*T tokens in one MXU pass ---
    # TODO(synk): at production sizes cast operands to bf16 (keep f32 accum).
    x = x_ref[...].reshape(B * T, hidden_in)
    qkv = jnp.dot(x, wqkv_ref[...], preferred_element_type=jnp.float32) + bqkv_ref[...]
    q_all = qkv[:, 0 * hd:1 * hd]        # (B*T, H*D); head h in lanes [h*D,(h+1)*D)
    k_all = qkv[:, 1 * hd:2 * hd]
    v_all = qkv[:, 2 * hd:3 * hd]

    # --- fused RoPE tables (exact; non-rotated lanes pass through) ---
    cos = cos_ref[...]
    sin_e = sin_e_ref[...]
    sin_o = sin_o_ref[...]

    def rope(t):
        # even lane 2i:   t[2i]*cos  - t[2i+1]*sin   (roll(-1) * sin_even)
        # odd  lane 2i+1: t[2i+1]*cos + t[2i]*sin    (roll(+1) * sin_odd)
        # TODO(synk): use pltpu.roll + rope_dim-restricted tables once the
        # per-head lane width is a multiple of 128.
        return (t * cos
                + jnp.roll(t, -1, axis=-1) * sin_e
                + jnp.roll(t, 1, axis=-1) * sin_o)

    # --- in-kernel additive score mask (replaces the dense (T,T) bias input):
    #     causal only on the rows that are global tokens.
    row = lax.broadcasted_iota(jnp.int32, (T, T), 0)
    col = lax.broadcasted_iota(jnp.int32, (T, T), 1)
    is_global_row = glob_ref[...] > 0.5                      # (T, 1) bool
    bias = jnp.where(jnp.logical_and(col > row, is_global_row),
                     MASK_VAL, 0.0)                          # (T, T) f32

    # contract last dims of both operands (q @ k^T without materialising k.T)
    dn = (((1,), (1,)), ((), ()))

    # --- attention per batch element / head (static unroll: B, H tiny) ---
    attn_rows = []
    for b in range(B):
        sl = slice(b * T, (b + 1) * T)                       # sublane-aligned
        qb = rope(q_all[sl]) * scale                         # fold 1/sqrt(D) once
        kb = rope(k_all[sl])
        vb = v_all[sl]
        head_outs = []
        for h in range(num_heads):
            lo, hi = h * head_dim, (h + 1) * head_dim
            s = lax.dot_general(qb[:, lo:hi], kb[:, lo:hi], dn,
                                preferred_element_type=jnp.float32) + bias
            s = s - jnp.max(s, axis=-1, keepdims=True)
            p = jnp.exp(s)
            inv_l = pl.reciprocal(jnp.sum(p, axis=-1, keepdims=True), approx=True)
            oh = jnp.dot(p, vb[:, lo:hi],
                         preferred_element_type=jnp.float32) * inv_l
            head_outs.append(oh)                             # (T, D)
        attn_rows.append(jnp.concatenate(head_outs, axis=-1))  # (T, H*D)

    # --- ONE fused out-projection for all tokens (lane-dense, padded width) ---
    attn_all = jnp.concatenate(attn_rows, axis=0)            # (B*T, H*D)
    y = jnp.dot(attn_all, wout_ref[...],
                preferred_element_type=jnp.float32) + bout_ref[...]
    o_ref[...] = y.reshape(B, T, -1).astype(o_ref.dtype)     # unmasked 128-lane store


def self_attention_forward(x, params, rope_consts, *, num_heads, head_dim,
                           global_token_indices):
    """Fused SelfAttention forward: one pallas_call, single grid step."""
    B, T, hidden = x.shape
    hd = num_heads * head_dim
    cos_full, sin_even, sin_odd = rope_consts
    cos_t, sin_e_t, sin_o_t = cos_full[:T], sin_even[:T], sin_odd[:T]

    # O(T) per-row "is a global token" flag (replaces the O(T^2) bias tensor).
    glob_np = np.zeros((T, 1), np.float32)
    for g in global_token_indices:
        if g < T:
            glob_np[g, 0] = 1.0
    glob = jnp.asarray(glob_np)

    # Lane-dense output: zero-pad the out-projection to a multiple of 128
    # lanes so every kernel store is an unmasked vst; slice back afterwards.
    out_lanes = ((hidden + 127) // 128) * 128
    w_out_p = jnp.zeros((hd, out_lanes), jnp.float32).at[:, :hidden].set(params["w_out"])
    b_out_p = jnp.zeros((1, out_lanes), jnp.float32).at[:, :hidden].set(params["b_out"])

    kern = functools.partial(
        _fused_self_attention_kernel,
        batch=B, seq_len=T,
        num_heads=num_heads, head_dim=head_dim,
        scale=1.0 / math.sqrt(head_dim),
    )

    # No grid: everything (x, weights, RoPE tables, flags) fits in VMEM as
    # whole-array blocks; a single step avoids per-step pipeline overhead on
    # single-TC chips.  TODO(synk): at production sizes switch to a
    # ("parallel" q-tile, "arbitrary" kv-tile) grid with flash-style online
    # softmax, bf16 operands and pl.Buffered(1) constant weight blocks.
    out = pl.pallas_call(
        kern,
        out_shape=jax.ShapeDtypeStruct((B, T, out_lanes), x.dtype),
    )(x, params["w_qkv"], params["b_qkv"].reshape(1, -1),
      cos_t, sin_e_t, sin_o_t, glob, w_out_p, b_out_p)

    return out[..., :hidden]


# ----------------------- pure-JAX reference (PyTorch) ------------------------


def apply_rotary(x, cos, sin, rope_dim):
    # x: (B, H, T, D); cos/sin: (1, 1, T, rope_dim//2)
    x_rot = x[..., :rope_dim].reshape(*x.shape[:-1], rope_dim // 2, 2)
    x1, x2 = x_rot[..., 0], x_rot[..., 1]
    rotated = jnp.stack(
        [x1 * cos - x2 * sin, x1 * sin + x2 * cos], axis=-1
    ).reshape(*x.shape[:-1], rope_dim)
    return jnp.concatenate([rotated, x[..., rope_dim:]], axis=-1)


def reference_forward(x, params, *, num_heads, head_dim, rope_dim,
                      global_token_indices, max_seq_length):
    B, T, hidden = x.shape
    qkv = x @ params["w_qkv"] + params["b_qkv"]
    qkv = qkv.reshape(B, T, 3, num_heads, head_dim)
    q = jnp.transpose(qkv[:, :, 0], (0, 2, 1, 3))
    k = jnp.transpose(qkv[:, :, 1], (0, 2, 1, 3))
    v = jnp.transpose(qkv[:, :, 2], (0, 2, 1, 3))
    if rope_dim > 0:
        cos_c, sin_c = rotary_caches(rope_dim, max_seq_length)
        cos = cos_c[None, None, :T, :]
        sin = sin_c[None, None, :T, :]
        q = apply_rotary(q, cos, sin, rope_dim)
        k = apply_rotary(k, cos, sin, rope_dim)

    valid_idx = jnp.array([g for g in global_token_indices if g < T], jnp.int32)

    s = jnp.einsum("bhqd,bhkd->bhqk", q, k) / math.sqrt(head_dim)
    p_local = jax.nn.softmax(s, axis=-1)
    out_local = jnp.einsum("bhqk,bhkd->bhqd", p_local, v)

    s_glob = s[:, :, valid_idx, :]                       # (B, H, G, T)
    col = jnp.arange(T)[None, None, None, :]
    row = valid_idx[None, None, :, None]
    s_glob = jnp.where(col > row, MASK_VAL, s_glob)
    p_glob = jax.nn.softmax(s_glob, axis=-1)
    out_glob = jnp.einsum("bhgk,bhkd->bhgd", p_glob, v)
    out_local = out_local.at[:, :, valid_idx].set(out_glob)

    attn_out = jnp.transpose(out_local, (0, 2, 1, 3)).reshape(B, T, -1)
    return attn_out @ params["w_out"] + params["b_out"]


# ----------------------------------- main ------------------------------------


if __name__ == "__main__":
    # config (matches the PyTorch module at small scale)
    B, T = 2, 8
    hidden = 32
    num_heads = 4
    head_dim = hidden // num_heads          # 8
    rope_dim = 4
    max_seq_length = 64
    global_token_indices = [2, 3, 4, 5]

    key = jax.random.PRNGKey(0)
    kx, kw1, kb1, kw2, kb2 = jax.random.split(key, 5)

    x = jax.random.normal(kx, (B, T, hidden), jnp.float32)

    # qkv_proj: xavier_normal weight (fan_in=hidden, fan_out=3*H*D), uniform bias
    d_qkv = num_heads * head_dim * 3
    xavier_std = math.sqrt(2.0 / (hidden + d_qkv))
    params = {
        "w_qkv": xavier_std * jax.random.normal(kw1, (hidden, d_qkv), jnp.float32),
        "b_qkv": (1.0 / math.sqrt(hidden))
        * jax.random.uniform(kb1, (d_qkv,), jnp.float32, -1.0, 1.0),
        "w_out": (1.0 / math.sqrt(num_heads * head_dim))
        * jax.random.uniform(kw2, (num_heads * head_dim, hidden), jnp.float32, -1.0, 1.0),
        "b_out": (1.0 / math.sqrt(num_heads * head_dim))
        * jax.random.uniform(kb2, (hidden,), jnp.float32, -1.0, 1.0),
    }

    # RoPE constants hoisted out of the forward (precomputed once).
    rope_consts = build_rope_constants(num_heads, head_dim, rope_dim, max_seq_length)

    y = self_attention_forward(
        x, params, rope_consts,
        num_heads=num_heads,
        head_dim=head_dim,
        global_token_indices=global_token_indices,
    )
    y = jax.block_until_ready(y)

    y_ref = reference_forward(
        x, params,
        num_heads=num_heads,
        head_dim=head_dim,
        rope_dim=rope_dim,
        global_token_indices=global_token_indices,
        max_seq_length=max_seq_length,
    )
    assert y.shape == (B, T, hidden)
    # tolerance accounts for the approx (EUP) reciprocal in the softmax denom
    assert jnp.allclose(y, y_ref, atol=2e-3, rtol=2e-3), "mismatch vs reference"

    print("KERNEL_OK")
</pallas_src>

<mosaic_0001>
module attributes {stable_mosaic.version = 11 : i64} {
  func.func @_fused_self_attention_kernel(%arg0: memref<2x8x32xf32, #tpu.memory_space<vmem>>, %arg1: memref<32x96xf32, #tpu.memory_space<vmem>>, %arg2: memref<1x96xf32, #tpu.memory_space<vmem>>, %arg3: memref<8x32xf32, #tpu.memory_space<vmem>>, %arg4: memref<8x32xf32, #tpu.memory_space<vmem>>, %arg5: memref<8x32xf32, #tpu.memory_space<vmem>>, %arg6: memref<8x1xf32, #tpu.memory_space<vmem>>, %arg7: memref<32x128xf32, #tpu.memory_space<vmem>>, %arg8: memref<1x128xf32, #tpu.memory_space<vmem>>, %arg9: memref<2x8x128xf32, #tpu.memory_space<vmem>>) attributes {dimension_semantics = [], scalar_prefetch = 0 : i64, scratch_operands = 0 : i64, tpu.core_type = #tpu.core_type<tc>} {
    %c0 = arith.constant 0 : index
    %c0_0 = arith.constant 0 : index
    %c0_1 = arith.constant 0 : index
    %0 = vector.load %arg0[%c0, %c0_0, %c0_1] : memref<2x8x32xf32, #tpu.memory_space<vmem>>, vector<2x8x32xf32>
    %1 = vector.shape_cast %0 : vector<2x8x32xf32> to vector<16x32xf32>
    %c0_2 = arith.constant 0 : index
    %c0_3 = arith.constant 0 : index
    %2 = vector.load %arg1[%c0_2, %c0_3] : memref<32x96xf32, #tpu.memory_space<vmem>>, vector<32x96xf32>
    %cst = arith.constant dense<0.000000e+00> : vector<16x96xf32>
    %3 = tpu.matmul %1, %2, %cst {dimension_numbers = #tpu.dot_dimension_numbers<[1], [0], [0], [1], [0, 0, 1, 1], [], []>} : vector<16x32xf32>, vector<32x96xf32>, vector<16x96xf32> -> vector<16x96xf32>
    %c0_4 = arith.constant 0 : index
    %c0_5 = arith.constant 0 : index
    %4 = vector.load %arg2[%c0_4, %c0_5] : memref<1x96xf32, #tpu.memory_space<vmem>>, vector<1x96xf32>
    %5 = vector.broadcast %4 : vector<1x96xf32> to vector<16x96xf32>
    %6 = arith.addf %3, %5 : vector<16x96xf32>
    %7 = vector.extract_strided_slice %6 {offsets = [0, 0], sizes = [16, 32], strides = [1, 1]} : vector<16x96xf32> to vector<16x32xf32>
    %8 = vector.extract_strided_slice %6 {offsets = [0, 32], sizes = [16, 32], strides = [1, 1]} : vector<16x96xf32> to vector<16x32xf32>
    %9 = vector.extract_strided_slice %6 {offsets = [0, 64], sizes = [16, 32], strides = [1, 1]} : vector<16x96xf32> to vector<16x32xf32>
    %c0_6 = arith.constant 0 : index
    %c0_7 = arith.constant 0 : index
    %10 = vector.load %arg3[%c0_6, %c0_7] : memref<8x32xf32, #tpu.memory_space<vmem>>, vector<8x32xf32>
    %c0_8 = arith.constant 0 : index
    %c0_9 = arith.constant 0 : index
    %11 = vector.load %arg4[%c0_8, %c0_9] : memref<8x32xf32, #tpu.memory_space<vmem>>, vector<8x32xf32>
    %c0_10 = arith.constant 0 : index
    %c0_11 = arith.constant 0 : index
    %12 = vector.load %arg5[%c0_10, %c0_11] : memref<8x32xf32, #tpu.memory_space<vmem>>, vector<8x32xf32>
    %13 = tpu.iota {dimensions = array<i32: 0>} : vector<8x8xi32>
    %14 = tpu.iota {dimensions = array<i32: 1>} : vector<8x8xi32>
    %c0_12 = arith.constant 0 : index
    %c0_13 = arith.constant 0 : index
    %15 = vector.load %arg6[%c0_12, %c0_13] : memref<8x1xf32, #tpu.memory_space<vmem>>, vector<8x1xf32>
    %cst_14 = arith.constant 5.000000e-01 : f32
    %16 = vector.broadcast %cst_14 : f32 to vector<8x1xf32>
    %17 = arith.cmpf ogt, %15, %16 : vector<8x1xf32>
    %18 = arith.cmpi sgt, %14, %13 : vector<8x8xi32>
    %19 = vector.broadcast %17 : vector<8x1xi1> to vector<8x8xi1>
    %20 = arith.andi %18, %19 : vector<8x8xi1>
    %cst_15 = arith.constant -1.000000e+09 : f32
    %cst_16 = arith.constant 0.000000e+00 : f32
    %21 = vector.broadcast %cst_15 : f32 to vector<8x8xf32>
    %22 = vector.broadcast %cst_16 : f32 to vector<8x8xf32>
    %23 = arith.select %20, %21, %22 : vector<8x8xi1>, vector<8x8xf32>
    %24 = vector.extract_strided_slice %7 {offsets = [0, 0], sizes = [8, 32], strides = [1, 1]} : vector<16x32xf32> to vector<8x32xf32>
    %25 = arith.mulf %24, %10 : vector<8x32xf32>
    %26 = vector.extract_strided_slice %24 {offsets = [0, 1], sizes = [8, 31], strides = [1, 1]} : vector<8x32xf32> to vector<8x31xf32>
    %27 = vector.extract_strided_slice %24 {offsets = [0, 0], sizes = [8, 1], strides = [1, 1]} : vector<8x32xf32> to vector<8x1xf32>
    %28 = tpu.concatenate %26, %27 in 1 : vector<8x31xf32>, vector<8x1xf32> -> vector<8x32xf32>
    %29 = arith.mulf %28, %11 : vector<8x32xf32>
    %30 = arith.addf %25, %29 : vector<8x32xf32>
    %31 = vector.extract_strided_slice %24 {offsets = [0, 31], sizes = [8, 1], strides = [1, 1]} : vector<8x32xf32> to vector<8x1xf32>
    %32 = vector.extract_strided_slice %24 {offsets = [0, 0], sizes = [8, 31], strides = [1, 1]} : vector<8x32xf32> to vector<8x31xf32>
    %33 = tpu.concatenate %31, %32 in 1 : vector<8x1xf32>, vector<8x31xf32> -> vector<8x32xf32>
    %34 = arith.mulf %33, %12 : vector<8x32xf32>
    %35 = arith.addf %30, %34 : vector<8x32xf32>
    %cst_17 = arith.constant 0.353553385 : f32
    %36 = vector.broadcast %cst_17 : f32 to vector<8x32xf32>
    %37 = arith.mulf %35, %36 : vector<8x32xf32>
    %38 = vector.extract_strided_slice %8 {offsets = [0, 0], sizes = [8, 32], strides = [1, 1]} : vector<16x32xf32> to vector<8x32xf32>
    %39 = arith.mulf %38, %10 : vector<8x32xf32>
    %40 = vector.extract_strided_slice %38 {offsets = [0, 1], sizes = [8, 31], strides = [1, 1]} : vector<8x32xf32> to vector<8x31xf32>
    %41 = vector.extract_strided_slice %38 {offsets = [0, 0], sizes = [8, 1], strides = [1, 1]} : vector<8x32xf32> to vector<8x1xf32>
    %42 = tpu.concatenate %40, %41 in 1 : vector<8x31xf32>, vector<8x1xf32> -> vector<8x32xf32>
    %43 = arith.mulf %42, %11 : vector<8x32xf32>
    %44 = arith.addf %39, %43 : vector<8x32xf32>
    %45 = vector.extract_strided_slice %38 {offsets = [0, 31], sizes = [8, 1], strides = [1, 1]} : vector<8x32xf32> to vector<8x1xf32>
    %46 = vector.extract_strided_slice %38 {offsets = [0, 0], sizes = [8, 31], strides = [1, 1]} : vector<8x32xf32> to vector<8x31xf32>
    %47 = tpu.concatenate %45, %46 in 1 : vector<8x1xf32>, vector<8x31xf32> -> vector<8x32xf32>
    %48 = arith.mulf %47, %12 : vector<8x32xf32>
    %49 = arith.addf %44, %48 : vector<8x32xf32>
    %50 = vector.extract_strided_slice %9 {offsets = [0, 0], sizes = [8, 32], strides = [1, 1]} : vector<16x32xf32> to vector<8x32xf32>
    %51 = vector.extract_strided_slice %37 {offsets = [0, 0], sizes = [8, 8], strides = [1, 1]} : vector<8x32xf32> to vector<8x8xf32>
    %52 = vector.extract_strided_slice %49 {offsets = [0, 0], sizes = [8, 8], strides = [1, 1]} : vector<8x32xf32> to vector<8x8xf32>
    %cst_18 = arith.constant dense<0.000000e+00> : vector<8x8xf32>
    %53 = tpu.matmul %51, %52, %cst_18 {dimension_numbers = #tpu.dot_dimension_numbers<[1], [1], [0], [0], [0, 0, 1, 0], [], []>} : vector<8x8xf32>, vector<8x8xf32>, vector<8x8xf32> -> vector<8x8xf32>
    %54 = arith.addf %53, %23 : vector<8x8xf32>
    %cst_19 = arith.constant dense<0xFF800000> : vector<8xf32>
    %55 = vector.multi_reduction <maximumf>, %54, %cst_19 [1] : vector<8x8xf32> to vector<8xf32>
    %56 = vector.shape_cast %55 : vector<8xf32> to vector<8x1xf32>
    %57 = vector.broadcast %56 : vector<8x1xf32> to vector<8x8xf32>
    %58 = arith.subf %54, %57 : vector<8x8xf32>
    %59 = math.exp %58 : vector<8x8xf32>
    %cst_20 = arith.constant dense<0.000000e+00> : vector<8xf32>
    %60 = vector.multi_reduction <add>, %59, %cst_20 [1] : vector<8x8xf32> to vector<8xf32>
    %61 = vector.shape_cast %60 : vector<8xf32> to vector<8x1xf32>
    %62 = tpu.reciprocal %61 {approx = true} : vector<8x1xf32> -> vector<8x1xf32>
    %63 = vector.extract_strided_slice %50 {offsets = [0, 0], sizes = [8, 8], strides = [1, 1]} : vector<8x32xf32> to vector<8x8xf32>
    %cst_21 = arith.constant dense<0.000000e+00> : vector<8x8xf32>
    %64 = tpu.matmul %59, %63, %cst_21 {dimension_numbers = #tpu.dot_dimension_numbers<[1], [0], [0], [1], [0, 0, 1, 1], [], []>} : vector<8x8xf32>, vector<8x8xf32>, vector<8x8xf32> -> vector<8x8xf32>
    %65 = vector.broadcast %62 : vector<8x1xf32> to vector<8x8xf32>
    %66 = arith.mulf %64, %65 : vector<8x8xf32>
    %67 = vector.extract_strided_slice %37 {offsets = [0, 8], sizes = [8, 8], strides = [1, 1]} : vector<8x32xf32> to vector<8x8xf32>
    %68 = vector.extract_strided_slice %49 {offsets = [0, 8], sizes = [8, 8], strides = [1, 1]} : vector<8x32xf32> to vector<8x8xf32>
    %cst_22 = arith.constant dense<0.000000e+00> : vector<8x8xf32>
    %69 = tpu.matmul %67, %68, %cst_22 {dimension_numbers = #tpu.dot_dimension_numbers<[1], [1], [0], [0], [0, 0, 1, 0], [], []>} : vector<8x8xf32>, vector<8x8xf32>, vector<8x8xf32> -> vector<8x8xf32>
    %70 = arith.addf %69, %23 : vector<8x8xf32>
    %cst_23 = arith.constant dense<0xFF800000> : vector<8xf32>
    %71 = vector.multi_reduction <maximumf>, %70, %cst_23 [1] : vector<8x8xf32> to vector<8xf32>
    %72 = vector.shape_cast %71 : vector<8xf32> to vector<8x1xf32>
    %73 = vector.broadcast %72 : vector<8x1xf32> to vector<8x8xf32>
    %74 = arith.subf %70, %73 : vector<8x8xf32>
    %75 = math.exp %74 : vector<8x8xf32>
    %cst_24 = arith.constant dense<0.000000e+00> : vector<8xf32>
    %76 = vector.multi_reduction <add>, %75, %cst_24 [1] : vector<8x8xf32> to vector<8xf32>
    %77 = vector.shape_cast %76 : vector<8xf32> to vector<8x1xf32>
    %78 = tpu.reciprocal %77 {approx = true} : vector<8x1xf32> -> vector<8x1xf32>
    %79 = vector.extract_strided_slice %50 {offsets = [0, 8], sizes = [8, 8], strides = [1, 1]} : vector<8x32xf32> to vector<8x8xf32>
    %cst_25 = arith.constant dense<0.000000e+00> : vector<8x8xf32>
    %80 = tpu.matmul %75, %79, %cst_25 {dimension_numbers = #tpu.dot_dimension_numbers<[1], [0], [0], [1], [0, 0, 1, 1], [], []>} : vector<8x8xf32>, vector<8x8xf32>, vector<8x8xf32> -> vector<8x8xf32>
    %81 = vector.broadcast %78 : vector<8x1xf32> to vector<8x8xf32>
    %82 = arith.mulf %80, %81 : vector<8x8xf32>
    %83 = vector.extract_strided_slice %37 {offsets = [0, 16], sizes = [8, 8], strides = [1, 1]} : vector<8x32xf32> to vector<8x8xf32>
    %84 = vector.extract_strided_slice %49 {offsets = [0, 16], sizes = [8, 8], strides = [1, 1]} : vector<8x32xf32> to vector<8x8xf32>
    %cst_26 = arith.constant dense<0.000000e+00> : vector<8x8xf32>
    %85 = tpu.matmul %83, %84, %cst_26 {dimension_numbers = #tpu.dot_dimension_numbers<[1], [1], [0], [0], [0, 0, 1, 0], [], []>} : vector<8x8xf32>, vector<8x8xf32>, vector<8x8xf32> -> vector<8x8xf32>
    %86 = arith.addf %85, %23 : vector<8x8xf32>
    %cst_27 = arith.constant dense<0xFF800000> : vector<8xf32>
    %87 = vector.multi_reduction <maximumf>, %86, %cst_27 [1] : vector<8x8xf32> to vector<8xf32>
    %88 = vector.shape_cast %87 : vector<8xf32> to vector<8x1xf32>
    %89 = vector.broadcast %88 : vector<8x1xf32> to vector<8x8xf32>
    %90 = arith.subf %86, %89 : vector<8x8xf32>
    %91 = math.exp %90 : vector<8x8xf32>
    %cst_28 = arith.constant dense<0.000000e+00> : vector<8xf32>
    %92 = vector.multi_reduction <add>, %91, %cst_28 [1] : vector<8x8xf32> to vector<8xf32>
    %93 = vector.shape_cast %92 : vector<8xf32> to vector<8x1xf32>
    %94 = tpu.reciprocal %93 {approx = true} : vector<8x1xf32> -> vector<8x1xf32>
    %95 = vector.extract_strided_slice %50 {offsets = [0, 16], sizes = [8, 8], strides = [1, 1]} : vector<8x32xf32> to vector<8x8xf32>
    %cst_29 = arith.constant dense<0.000000e+00> : vector<8x8xf32>
    %96 = tpu.matmul %91, %95, %cst_29 {dimension_numbers = #tpu.dot_dimension_numbers<[1], [0], [0], [1], [0, 0, 1, 1], [], []>} : vector<8x8xf32>, vector<8x8xf32>, vector<8x8xf32> -> vector<8x8xf32>
    %97 = vector.broadcast %94 : vector<8x1xf32> to vector<8x8xf32>
    %98 = arith.mulf %96, %97 : vector<8x8xf32>
    %99 = vector.extract_strided_slice %37 {offsets = [0, 24], sizes = [8, 8], strides = [1, 1]} : vector<8x32xf32> to vector<8x8xf32>
    %100 = vector.extract_strided_slice %49 {offsets = [0, 24], sizes = [8, 8], strides = [1, 1]} : vector<8x32xf32> to vector<8x8xf32>
    %cst_30 = arith.constant dense<0.000000e+00> : vector<8x8xf32>
    %101 = tpu.matmul %99, %100, %cst_30 {dimension_numbers = #tpu.dot_dimension_numbers<[1], [1], [0], [0], [0, 0, 1, 0], [], []>} : vector<8x8xf32>, vector<8x8xf32>, vector<8x8xf32> -> vector<8x8xf32>
    %102 = arith.addf %101, %23 : vector<8x8xf32>
    %cst_31 = arith.constant dense<0xFF800000> : vector<8xf32>
    %103 = vector.multi_reduction <maximumf>, %102, %cst_31 [1] : vector<8x8xf32> to vector<8xf32>
    %104 = vector.shape_cast %103 : vector<8xf32> to vector<8x1xf32>
    %105 = vector.broadcast %104 : vector<8x1xf32> to vector<8x8xf32>
    %106 = arith.subf %102, %105 : vector<8x8xf32>
    %107 = math.exp %106 : vector<8x8xf32>
    %cst_32 = arith.constant dense<0.000000e+00> : vector<8xf32>
    %108 = vector.multi_reduction <add>, %107, %cst_32 [1] : vector<8x8xf32> to vector<8xf32>
    %109 = vector.shape_cast %108 : vector<8xf32> to vector<8x1xf32>
    %110 = tpu.reciprocal %109 {approx = true} : vector<8x1xf32> -> vector<8x1xf32>
    %111 = vector.extract_strided_slice %50 {offsets = [0, 24], sizes = [8, 8], strides = [1, 1]} : vector<8x32xf32> to vector<8x8xf32>
    %cst_33 = arith.constant dense<0.000000e+00> : vector<8x8xf32>
    %112 = tpu.matmul %107, %111, %cst_33 {dimension_numbers = #tpu.dot_dimension_numbers<[1], [0], [0], [1], [0, 0, 1, 1], [], []>} : vector<8x8xf32>, vector<8x8xf32>, vector<8x8xf32> -> vector<8x8xf32>
    %113 = vector.broadcast %110 : vector<8x1xf32> to vector<8x8xf32>
    %114 = arith.mulf %112, %113 : vector<8x8xf32>
    %115 = tpu.concatenate %66, %82, %98, %114 in 1 : vector<8x8xf32>, vector<8x8xf32>, vector<8x8xf32>, vector<8x8xf32> -> vector<8x32xf32>
    %116 = vector.extract_strided_slice %7 {offsets = [8, 0], sizes = [8, 32], strides = [1, 1]} : vector<16x32xf32> to vector<8x32xf32>
    %117 = arith.mulf %116, %10 : vector<8x32xf32>
    %118 = vector.extract_strided_slice %116 {offsets = [0, 1], sizes = [8, 31], strides = [1, 1]} : vector<8x32xf32> to vector<8x31xf32>
    %119 = vector.extract_strided_slice %116 {offsets = [0, 0], sizes = [8, 1], strides = [1, 1]} : vector<8x32xf32> to vector<8x1xf32>
    %120 = tpu.concatenate %118, %119 in 1 : vector<8x31xf32>, vector<8x1xf32> -> vector<8x32xf32>
    %121 = arith.mulf %120, %11 : vector<8x32xf32>
    %122 = arith.addf %117, %121 : vector<8x32xf32>
    %123 = vector.extract_strided_slice %116 {offsets = [0, 31], sizes = [8, 1], strides = [1, 1]} : vector<8x32xf32> to vector<8x1xf32>
    %124 = vector.extract_strided_slice %116 {offsets = [0, 0], sizes = [8, 31], strides = [1, 1]} : vector<8x32xf32> to vector<8x31xf32>
    %125 = tpu.concatenate %123, %124 in 1 : vector<8x1xf32>, vector<8x31xf32> -> vector<8x32xf32>
    %126 = arith.mulf %125, %12 : vector<8x32xf32>
    %127 = arith.addf %122, %126 : vector<8x32xf32>
    %cst_34 = arith.constant 0.353553385 : f32
    %128 = vector.broadcast %cst_34 : f32 to vector<8x32xf32>
    %129 = arith.mulf %127, %128 : vector<8x32xf32>
    %130 = vector.extract_strided_slice %8 {offsets = [8, 0], sizes = [8, 32], strides = [1, 1]} : vector<16x32xf32> to vector<8x32xf32>
    %131 = arith.mulf %130, %10 : vector<8x32xf32>
    %132 = vector.extract_strided_slice %130 {offsets = [0, 1], sizes = [8, 31], strides = [1, 1]} : vector<8x32xf32> to vector<8x31xf32>
    %133 = vector.extract_strided_slice %130 {offsets = [0, 0], sizes = [8, 1], strides = [1, 1]} : vector<8x32xf32> to vector<8x1xf32>
    %134 = tpu.concatenate %132, %133 in 1 : vector<8x31xf32>, vector<8x1xf32> -> vector<8x32xf32>
    %135 = arith.mulf %134, %11 : vector<8x32xf32>
    %136 = arith.addf %131, %135 : vector<8x32xf32>
    %137 = vector.extract_strided_slice %130 {offsets = [0, 31], sizes = [8, 1], strides = [1, 1]} : vector<8x32xf32> to vector<8x1xf32>
    %138 = vector.extract_strided_slice %130 {offsets = [0, 0], sizes = [8, 31], strides = [1, 1]} : vector<8x32xf32> to vector<8x31xf32>
    %139 = tpu.concatenate %137, %138 in 1 : vector<8x1xf32>, vector<8x31xf32> -> vector<8x32xf32>
    %140 = arith.mulf %139, %12 : vector<8x32xf32>
    %141 = arith.addf %136, %140 : vector<8x32xf32>
    %142 = vector.extract_strided_slice %9 {offsets = [8, 0], sizes = [8, 32], strides = [1, 1]} : vector<16x32xf32> to vector<8x32xf32>
    %143 = vector.extract_strided_slice %129 {offsets = [0, 0], sizes = [8, 8], strides = [1, 1]} : vector<8x32xf32> to vector<8x8xf32>
    %144 = vector.extract_strided_slice %141 {offsets = [0, 0], sizes = [8, 8], strides = [1, 1]} : vector<8x32xf32> to vector<8x8xf32>
    %cst_35 = arith.constant dense<0.000000e+00> : vector<8x8xf32>
    %145 = tpu.matmul %143, %144, %cst_35 {dimension_numbers = #tpu.dot_dimension_numbers<[1], [1], [0], [0], [0, 0, 1, 0], [], []>} : vector<8x8xf32>, vector<8x8xf32>, vector<8x8xf32> -> vector<8x8xf32>
    %146 = arith.addf %145, %23 : vector<8x8xf32>
    %cst_36 = arith.constant dense<0xFF800000> : vector<8xf32>
    %147 = vector.multi_reduction <maximumf>, %146, %cst_36 [1] : vector<8x8xf32> to vector<8xf32>
    %148 = vector.shape_cast %147 : vector<8xf32> to vector<8x1xf32>
    %149 = vector.broadcast %148 : vector<8x1xf32> to vector<8x8xf32>
    %150 = arith.subf %146, %149 : vector<8x8xf32>
    %151 = math.exp %150 : vector<8x8xf32>
    %cst_37 = arith.constant dense<0.000000e+00> : vector<8xf32>
    %152 = vector.multi_reduction <add>, %151, %cst_37 [1] : vector<8x8xf32> to vector<8xf32>
    %153 = vector.shape_cast %152 : vector<8xf32> to vector<8x1xf32>
    %154 = tpu.reciprocal %153 {approx = true} : vector<8x1xf32> -> vector<8x1xf32>
    %155 = vector.extract_strided_slice %142 {offsets = [0, 0], sizes = [8, 8], strides = [1, 1]} : vector<8x32xf32> to vector<8x8xf32>
    %cst_38 = arith.constant dense<0.000000e+00> : vector<8x8xf32>
    %156 = tpu.matmul %151, %155, %cst_38 {dimension_numbers = #tpu.dot_dimension_numbers<[1], [0], [0], [1], [0, 0, 1, 1], [], []>} : vector<8x8xf32>, vector<8x8xf32>, vector<8x8xf32> -> vector<8x8xf32>
    %157 = vector.broadcast %154 : vector<8x1xf32> to vector<8x8xf32>
    %158 = arith.mulf %156, %157 : vector<8x8xf32>
    %159 = vector.extract_strided_slice %129 {offsets = [0, 8], sizes = [8, 8], strides = [1, 1]} : vector<8x32xf32> to vector<8x8xf32>
    %160 = vector.extract_strided_slice %141 {offsets = [0, 8], sizes = [8, 8], strides = [1, 1]} : vector<8x32xf32> to vector<8x8xf32>
    %cst_39 = arith.constant dense<0.000000e+00> : vector<8x8xf32>
    %161 = tpu.matmul %159, %160, %cst_39 {dimension_numbers = #tpu.dot_dimension_numbers<[1], [1], [0], [0], [0, 0, 1, 0], [], []>} : vector<8x8xf32>, vector<8x8xf32>, vector<8x8xf32> -> vector<8x8xf32>
    %162 = arith.addf %161, %23 : vector<8x8xf32>
    %cst_40 = arith.constant dense<0xFF800000> : vector<8xf32>
    %163 = vector.multi_reduction <maximumf>, %162, %cst_40 [1] : vector<8x8xf32> to vector<8xf32>
    %164 = vector.shape_cast %163 : vector<8xf32> to vector<8x1xf32>
    %165 = vector.broadcast %164 : vector<8x1xf32> to vector<8x8xf32>
    %166 = arith.subf %162, %165 : vector<8x8xf32>
    %167 = math.exp %166 : vector<8x8xf32>
    %cst_41 = arith.constant dense<0.000000e+00> : vector<8xf32>
    %168 = vector.multi_reduction <add>, %167, %cst_41 [1] : vector<8x8xf32> to vector<8xf32>
    %169 = vector.shape_cast %168 : vector<8xf32> to vector<8x1xf32>
    %170 = tpu.reciprocal %169 {approx = true} : vector<8x1xf32> -> vector<8x1xf32>
    %171 = vector.extract_strided_slice %142 {offsets = [0, 8], sizes = [8, 8], strides = [1, 1]} : vector<8x32xf32> to vector<8x8xf32>
    %cst_42 = arith.constant dense<0.000000e+00> : vector<8x8xf32>
    %172 = tpu.matmul %167, %171, %cst_42 {dimension_numbers = #tpu.dot_dimension_numbers<[1], [0], [0], [1], [0, 0, 1, 1], [], []>} : vector<8x8xf32>, vector<8x8xf32>, vector<8x8xf32> -> vector<8x8xf32>
    %173 = vector.broadcast %170 : vector<8x1xf32> to vector<8x8xf32>
    %174 = arith.mulf %172, %173 : vector<8x8xf32>
    %175 = vector.extract_strided_slice %129 {offsets = [0, 16], sizes = [8, 8], strides = [1, 1]} : vector<8x32xf32> to vector<8x8xf32>
    %176 = vector.extract_strided_slice %141 {offsets = [0, 16], sizes = [8, 8], strides = [1, 1]} : vector<8x32xf32> to vector<8x8xf32>
    %cst_43 = arith.constant dense<0.000000e+00> : vector<8x8xf32>
    %177 = tpu.matmul %175, %176, %cst_43 {dimension_numbers = #tpu.dot_dimension_numbers<[1], [1], [0], [0], [0, 0, 1, 0], [], []>} : vector<8x8xf32>, vector<8x8xf32>, vector<8x8xf32> -> vector<8x8xf32>
    %178 = arith.addf %177, %23 : vector<8x8xf32>
    %cst_44 = arith.constant dense<0xFF800000> : vector<8xf32>
    %179 = vector.multi_reduction <maximumf>, %178, %cst_44 [1] : vector<8x8xf32> to vector<8xf32>
    %180 = vector.shape_cast %179 : vector<8xf32> to vector<8x1xf32>
    %181 = vector.broadcast %180 : vector<8x1xf32> to vector<8x8xf32>
    %182 = arith.subf %178, %181 : vector<8x8xf32>
    %183 = math.exp %182 : vector<8x8xf32>
    %cst_45 = arith.constant dense<0.000000e+00> : vector<8xf32>
    %184 = vector.multi_reduction <add>, %183, %cst_45 [1] : vector<8x8xf32> to vector<8xf32>
    %185 = vector.shape_cast %184 : vector<8xf32> to vector<8x1xf32>
    %186 = tpu.reciprocal %185 {approx = true} : vector<8x1xf32> -> vector<8x1xf32>
    %187 = vector.extract_strided_slice %142 {offsets = [0, 16], sizes = [8, 8], strides = [1, 1]} : vector<8x32xf32> to vector<8x8xf32>
    %cst_46 = arith.constant dense<0.000000e+00> : vector<8x8xf32>
    %188 = tpu.matmul %183, %187, %cst_46 {dimension_numbers = #tpu.dot_dimension_numbers<[1], [0], [0], [1], [0, 0, 1, 1], [], []>} : vector<8x8xf32>, vector<8x8xf32>, vector<8x8xf32> -> vector<8x8xf32>
    %189 = vector.broadcast %186 : vector<8x1xf32> to vector<8x8xf32>
    %190 = arith.mulf %188, %189 : vector<8x8xf32>
    %191 = vector.extract_strided_slice %129 {offsets = [0, 24], sizes = [8, 8], strides = [1, 1]} : vector<8x32xf32> to vector<8x8xf32>
    %192 = vector.extract_strided_slice %141 {offsets = [0, 24], sizes = [8, 8], strides = [1, 1]} : vector<8x32xf32> to vector<8x8xf32>
    %cst_47 = arith.constant dense<0.000000e+00> : vector<8x8xf32>
    %193 = tpu.matmul %191, %192, %cst_47 {dimension_numbers = #tpu.dot_dimension_numbers<[1], [1], [0], [0], [0, 0, 1, 0], [], []>} : vector<8x8xf32>, vector<8x8xf32>, vector<8x8xf32> -> vector<8x8xf32>
    %194 = arith.addf %193, %23 : vector<8x8xf32>
    %cst_48 = arith.constant dense<0xFF800000> : vector<8xf32>
    %195 = vector.multi_reduction <maximumf>, %194, %cst_48 [1] : vector<8x8xf32> to vector<8xf32>
    %196 = vector.shape_cast %195 : vector<8xf32> to vector<8x1xf32>
    %197 = vector.broadcast %196 : vector<8x1xf32> to vector<8x8xf32>
    %198 = arith.subf %194, %197 : vector<8x8xf32>
    %199 = math.exp %198 : vector<8x8xf32>
    %cst_49 = arith.constant dense<0.000000e+00> : vector<8xf32>
    %200 = vector.multi_reduction <add>, %199, %cst_49 [1] : vector<8x8xf32> to vector<8xf32>
    %201 = vector.shape_cast %200 : vector<8xf32> to vector<8x1xf32>
    %202 = tpu.reciprocal %201 {approx = true} : vector<8x1xf32> -> vector<8x1xf32>
    %203 = vector.extract_strided_slice %142 {offsets = [0, 24], sizes = [8, 8], strides = [1, 1]} : vector<8x32xf32> to vector<8x8xf32>
    %cst_50 = arith.constant dense<0.000000e+00> : vector<8x8xf32>
    %204 = tpu.matmul %199, %203, %cst_50 {dimension_numbers = #tpu.dot_dimension_numbers<[1], [0], [0], [1], [0, 0, 1, 1], [], []>} : vector<8x8xf32>, vector<8x8xf32>, vector<8x8xf32> -> vector<8x8xf32>
    %205 = vector.broadcast %202 : vector<8x1xf32> to vector<8x8xf32>
    %206 = arith.mulf %204, %205 : vector<8x8xf32>
    %207 = tpu.concatenate %158, %174, %190, %206 in 1 : vector<8x8xf32>, vector<8x8xf32>, vector<8x8xf32>, vector<8x8xf32> -> vector<8x32xf32>
    %208 = tpu.concatenate %115, %207 in 0 : vector<8x32xf32>, vector<8x32xf32> -> vector<16x32xf32>
    %c0_51 = arith.constant 0 : index
    %c0_52 = arith.constant 0 : index
    %209 = vector.load %arg7[%c0_51, %c0_52] : memref<32x128xf32, #tpu.memory_space<vmem>>, vector<32x128xf32>
    %cst_53 = arith.constant dense<0.000000e+00> : vector<16x128xf32>
    %210 = tpu.matmul %208, %209, %cst_53 {dimension_numbers = #tpu.dot_dimension_numbers<[1], [0], [0], [1], [0, 0, 1, 1], [], []>} : vector<16x32xf32>, vector<32x128xf32>, vector<16x128xf32> -> vector<16x128xf32>
    %c0_54 = arith.constant 0 : index
    %c0_55 = arith.constant 0 : index
    %211 = vector.load %arg8[%c0_54, %c0_55] : memref<1x128xf32, #tpu.memory_space<vmem>>, vector<1x128xf32>
    %212 = vector.broadcast %211 : vector<1x128xf32> to vector<16x128xf32>
    %213 = arith.addf %210, %212 : vector<16x128xf32>
    %214 = vector.shape_cast %213 : vector<16x128xf32> to vector<2x8x128xf32>
    %c0_56 = arith.constant 0 : index
    %c0_57 = arith.constant 0 : index
    %c0_58 = arith.constant 0 : index
    %215 = vector.load %arg9[%c0_56, %c0_57, %c0_58] : memref<2x8x128xf32, #tpu.memory_space<vmem>>, vector<2x8x128xf32>
    tpu.vector_store %arg9[%c0_56, %c0_57, %c0_58], %214 {strides = array<i32>} : memref<2x8x128xf32, #tpu.memory_space<vmem>>, vector<2x8x128xf32>,
    return
  }
}

</mosaic_0001>

<llo_original>
// kernel: tpu_custom_call.1
$region0: #{tpu_custom_call.1}
  #allocation0 [shape = 'u32[]', space=smem, size = 0x4, offset = 0x4, fixed_abs, tag = 'smem constant byte address 0x4 - core index']
  #allocation1 [shape = 'u32[144,128]{1,0:T(1,128)}', space=vmem, size = 0x12000, scoped, tag = 'internal scratch']
  %s0 = inlined_call_operand.hbm [shape: f32[2,8,32], index: 0, kind: input, shape index: {}]
  %s1 = inlined_call_operand.hbm [shape: f32[32,96], index: 1, kind: input, shape index: {}]
  %s2 = inlined_call_operand.vmem [shape: f32[1,96], index: 2, kind: input, shape index: {}]
  %s3 = inlined_call_operand.hbm [shape: f32[8,32], index: 3, kind: input, shape index: {}]
  %s4 = inlined_call_operand.hbm [shape: f32[8,32], index: 4, kind: input, shape index: {}]
  %s5 = inlined_call_operand.hbm [shape: f32[8,32], index: 5, kind: input, shape index: {}]
  %s6 = inlined_call_operand.vmem [shape: f32[8,1], index: 6, kind: input, shape index: {}]
  %s7 = inlined_call_operand.vmem [shape: f32[32,128], index: 7, kind: input, shape index: {}]
  %s8 = inlined_call_operand.vmem [shape: f32[1,128], index: 8, kind: input, shape index: {}]
  %s9 = inlined_call_operand.hbm [shape: f32[2,8,128], index: 9, kind: output, shape index: {}]
  %s10 = sld [smem:[#allocation0]]
  $region66: #{tpu_custom_call.1} parent=0
    _
  %s12 = ssub.s32 1, %s10
  %s13 = scalar_select 0, %s12, %s10
  $region1: #{tpu_custom_call.1} parent=0
    #allocation2 [shape = 'u8[8192]{0}', space=vmem, size = 0x2000, scoped, tag = 'input window, operand 0, single buffered']
    #allocation3 [shape = 's32[1]{0}', space=sflag, size = 0x4, scoped, tag = 'scoped memory for tpu_custom_call.1']
    #allocation4 [shape = 's32[1]{0}', space=sflag, size = 0x4, scoped, tag = 'scoped memory for tpu_custom_call.1']
    #allocation5 [shape = 'u8[16384]{0}', space=vmem, size = 0x4000, scoped, tag = 'input window, operand 1, single buffered']
    #allocation6 [shape = 's32[1]{0}', space=sflag, size = 0x4, scoped, tag = 'scoped memory for tpu_custom_call.1']
    #allocation7 [shape = 'u8[4096]{0}', space=vmem, size = 0x1000, scoped, tag = 'input window, operand 3, single buffered']
    #allocation8 [shape = 'u8[4096]{0}', space=vmem, size = 0x1000, scoped, tag = 'input window, operand 4, single buffered']
    #allocation9 [shape = 's32[1]{0}', space=sflag, size = 0x4, scoped, tag = 'scoped memory for tpu_custom_call.1']
    #allocation10 [shape = 'u8[4096]{0}', space=vmem, size = 0x1000, scoped, tag = 'input window, operand 5, single buffered']
    #allocation11 [shape = 'u8[8192]{0}', space=vmem, size = 0x2000, scoped, tag = 'output window, operand 0, single buffered']
    %14 = vsyncpa [#allocation3], 0
    %15 = vsyncpa [#allocation6], 0
    %16 = vsyncpa [#allocation9], 0
    %17 = vsyncpa [#allocation4], 0
    // Predicated region
    $region2: #{tpu_custom_call.1} parent=1 // pred_check
      _
    $region3: #{tpu_custom_call.1} parent=1 // pred_check_branch
      %19 = sbr.rel (0) target = $region5
    $region4: #{tpu_custom_call.1} parent=1 // pred_region
      %s21 = ssub.s32 256, 256
      %22 = vsyncadd [#allocation3], %s21
      %s23 = sshll.u32 [#allocation2], 4
      %s24 = int_to_ptr.vmem [resolvable:$true] %s23
      %29 = dma.hbm_to_vmem [thread:$0]  %s0, 256, %s24, [#allocation3], 128, 128, 8
    $region5: #{tpu_custom_call.1} parent=1 // pred_fallthru
      _
    // Predicated region
    $region6: #{tpu_custom_call.1} parent=1 // pred_check
      _
    $region7: #{tpu_custom_call.1} parent=1 // pred_check_branch
      %31 = sbr.rel (0) target = $region9
    $region8: #{tpu_custom_call.1} parent=1 // pred_region
      %s33 = ssub.s32 512, 512
      %34 = vsyncadd [#allocation6], %s33
      %s35 = sshll.u32 [#allocation5], 4
      %s36 = int_to_ptr.vmem [resolvable:$true] %s35
      %41 = dma.hbm_to_vmem [thread:$0]  %s1, 512, %s36, [#allocation6], 128, 128, 8
    $region9: #{tpu_custom_call.1} parent=1 // pred_fallthru
      _
    // Predicated region
    $region10: #{tpu_custom_call.1} parent=1 // pred_check
      _
    $region11: #{tpu_custom_call.1} parent=1 // pred_check_branch
      %43 = sbr.rel (0) target = $region13
    $region12: #{tpu_custom_call.1} parent=1 // pred_region
      _
    $region13: #{tpu_custom_call.1} parent=1 // pred_fallthru
      _
    // Predicated region
    $region14: #{tpu_custom_call.1} parent=1 // pred_check
      _
    $region15: #{tpu_custom_call.1} parent=1 // pred_check_branch
      %45 = sbr.rel (0) target = $region17
    $region16: #{tpu_custom_call.1} parent=1 // pred_region
      %s47 = ssub.s32 128, 128
      %48 = vsyncadd [#allocation6], %s47
      %s50 = sshll.u32 [#allocation7], 4
      %s51 = int_to_ptr.vmem [resolvable:$true] %s50
      %53 = dma.hbm_to_vmem [thread:$0]  %s3, 128, %s51, [#allocation6]
    $region17: #{tpu_custom_call.1} parent=1 // pred_fallthru
      _
    // Predicated region
    $region18: #{tpu_custom_call.1} parent=1 // pred_check
      _
    $region19: #{tpu_custom_call.1} parent=1 // pred_check_branch
      %55 = sbr.rel (0) target = $region21
    $region20: #{tpu_custom_call.1} parent=1 // pred_region
      %s57 = ssub.s32 128, 128
      %58 = vsyncadd [#allocation9], %s57
      %s60 = sshll.u32 [#allocation8], 4
      %s61 = int_to_ptr.vmem [resolvable:$true] %s60
      %63 = dma.hbm_to_vmem [thread:$0]  %s4, 128, %s61, [#allocation9]
    $region21: #{tpu_custom_call.1} parent=1 // pred_fallthru
      _
    // Predicated region
    $region22: #{tpu_custom_call.1} parent=1 // pred_check
      _
    $region23: #{tpu_custom_call.1} parent=1 // pred_check_branch
      %65 = sbr.rel (0) target = $region25
    $region24: #{tpu_custom_call.1} parent=1 // pred_region
      %s67 = ssub.s32 128, 128
      %68 = vsyncadd [#allocation9], %s67
      %s70 = sshll.u32 [#allocation10], 4
      %s71 = int_to_ptr.vmem [resolvable:$true] %s70
      %73 = dma.hbm_to_vmem [thread:$0]  %s5, 128, %s71, [#allocation9]
    $region25: #{tpu_custom_call.1} parent=1 // pred_fallthru
      _
    // Predicated region
    $region26: #{tpu_custom_call.1} parent=1 // pred_check
      _
    $region27: #{tpu_custom_call.1} parent=1 // pred_check_branch
      %75 = sbr.rel (0) target = $region29
    $region28: #{tpu_custom_call.1} parent=1 // pred_region
      _
    $region29: #{tpu_custom_call.1} parent=1 // pred_fallthru
      _
    // Predicated region
    $region30: #{tpu_custom_call.1} parent=1 // pred_check
      _
    $region31: #{tpu_custom_call.1} parent=1 // pred_check_branch
      %77 = sbr.rel (0) target = $region33
    $region32: #{tpu_custom_call.1} parent=1 // pred_region
      _
    $region33: #{tpu_custom_call.1} parent=1 // pred_fallthru
      _
    // Predicated region
    $region34: #{tpu_custom_call.1} parent=1 // pred_check
      _
    $region35: #{tpu_custom_call.1} parent=1 // pred_check_branch
      %79 = sbr.rel (0) target = $region37
    $region36: #{tpu_custom_call.1} parent=1 // pred_region
      _
    $region37: #{tpu_custom_call.1} parent=1 // pred_fallthru
      _
    // Predicated region
    $region38: #{tpu_custom_call.1} parent=1 // pred_check
      _
    $region39: #{tpu_custom_call.1} parent=1 // pred_check_branch
      %81 = sbr.rel (0) target = $region41
    $region40: #{tpu_custom_call.1} parent=1 // pred_region
      %82 = dma.done [#allocation3], 256
    $region41: #{tpu_custom_call.1} parent=1 // pred_fallthru
      _
    // Predicated region
    $region42: #{tpu_custom_call.1} parent=1 // pred_check
      _
    $region43: #{tpu_custom_call.1} parent=1 // pred_check_branch
      %84 = sbr.rel (0) target = $region45
    $region44: #{tpu_custom_call.1} parent=1 // pred_region
      %85 = dma.done [#allocation6], 512
    $region45: #{tpu_custom_call.1} parent=1 // pred_fallthru
      _
    // Predicated region
    $region46: #{tpu_custom_call.1} parent=1 // pred_check
      _
    $region47: #{tpu_custom_call.1} parent=1 // pred_check_branch
      %87 = sbr.rel (0) target = $region49
    $region48: #{tpu_custom_call.1} parent=1 // pred_region
      %88 = dma.done [#allocation6], 128
    $region49: #{tpu_custom_call.1} parent=1 // pred_fallthru
      _
    // Predicated region
    $region50: #{tpu_custom_call.1} parent=1 // pred_check
      _
    $region51: #{tpu_custom_call.1} parent=1 // pred_check_branch
      %90 = sbr.rel (0) target = $region53
    $region52: #{tpu_custom_call.1} parent=1 // pred_region
      %91 = dma.done [#allocation9], 128
    $region53: #{tpu_custom_call.1} parent=1 // pred_fallthru
      _
    // Predicated region
    $region54: #{tpu_custom_call.1} parent=1 // pred_check
      _
    $region55: #{tpu_custom_call.1} parent=1 // pred_check_branch
      %93 = sbr.rel (0) target = $region57
    $region56: #{tpu_custom_call.1} parent=1 // pred_region
      %94 = dma.done [#allocation9], 128
    $region57: #{tpu_custom_call.1} parent=1 // pred_fallthru
      _
    %v95 = vld [vmem:[#allocation2] sm:$0xff]
    %v96 = vld [vmem:[#allocation2 + $0x8] sm:$0xff]
    %v97 = vld [vmem:[#allocation5] sm:$0xff]
    %v98 = vld [vmem:[#allocation5 + $0x8] sm:$0xff]
    %v99 = vld [vmem:[#allocation5 + $0x10] sm:$0xff]
    %v100 = vld [vmem:[#allocation5 + $0x18] sm:$0xff]
    %v101 = vld [vmem:[%s2] sm:$0x1]
    %v103 = vlaneseq
    %v104 = vshrl.u32 %v103, 7
    %v105 = vsub.s32 0, %v104
    %v106 = vrot.slane %v101, %v105
    %vm108 = vcmask 261120
    %v110 = vsel %vm108, %v95, 0
    %v113 = vsel %vm108, %v96, 0
    %115 = vmatprep.subr.mxu0 0.0
    %116 = vmatpush1.msra.mxu0 %v97
    %117 = vmatprep.subr.mxu0 0.0
    %118 = vmatpush1.msra.mxu0 %v98
    %119 = vmatprep.subr.mxu0 0.0
    %120 = vmatpush1.msra.mxu0 %v99
    %121 = vmatprep.subr.mxu0 0.0
    %122 = vmatpush1.msra.mxu0 %v100
    %123 = vmatprep.subr.mxu0 0.0
    %124 = vmatpush1.msra.mxu0 0.0
    %125 = vmatprep.subr.mxu0 0.0
    %126 = vmatpush1.msra.mxu0 0.0
    %127 = vmatprep.subr.mxu0 0.0
    %128 = vmatpush1.msra.mxu0 0.0
    %129 = vmatprep.subr.mxu0 0.0
    %130 = vmatpush1.msra.mxu0 0.0
    %131 = vmatprep.subr.mxu0 0.0
    %132 = vmatpush1.msra.mxu0 0.0
    %133 = vmatprep.subr.mxu0 0.0
    %134 = vmatpush1.msra.mxu0 0.0
    %135 = vmatprep.subr.mxu0 0.0
    %136 = vmatpush1.msra.mxu0 0.0
    %137 = vmatprep.subr.mxu0 0.0
    %138 = vmatpush1.msra.mxu0 0.0
    %139 = vmatprep.subr.mxu0 0.0
    %140 = vmatpush1.msra.mxu0 0.0
    %141 = vmatprep.subr.mxu0 0.0
    %142 = vmatpush1.msra.mxu0 0.0
    %143 = vmatprep.subr.mxu0 0.0
    %144 = vmatpush1.msra.mxu0 0.0
    %145 = vmatprep.subr.mxu0 0.0
    %146 = vmatpush1.msra.mxu0 0.0
    %147 = vmatprep.subr.mxu0 0.0
    %148 = vmatpush1.msra.mxu0 0.0
    %149 = vmatprep.subr.mxu0 0.0
    %150 = vmatpush1.msra.mxu0 0.0
    %151 = vmatprep.subr.mxu0 0.0
    %152 = vmatpush1.msra.mxu0 0.0
    %153 = vmatprep.subr.mxu0 0.0
    %154 = vmatpush1.msra.mxu0 0.0
    %155 = vmatprep.subr.mxu0 0.0
    %156 = vmatpush1.msra.mxu0 0.0
    %157 = vmatprep.subr.mxu0 0.0
    %158 = vmatpush1.msra.mxu0 0.0
    %159 = vmatprep.subr.mxu0 0.0
    %160 = vmatpush1.msra.mxu0 0.0
    %161 = vmatprep.subr.mxu0 0.0
    %162 = vmatpush1.msra.mxu0 0.0
    %163 = vmatprep.subr.mxu0 0.0
    %164 = vmatpush1.msra.mxu0 0.0
    %165 = vmatprep.subr.mxu0 0.0
    %166 = vmatpush1.msra.mxu0 0.0
    %167 = vmatprep.subr.mxu0 0.0
    %168 = vmatpush1.msra.mxu0 0.0
    %169 = vmatprep.subr.mxu0 0.0
    %170 = vmatpush1.msra.mxu0 0.0
    %171 = vmatprep.subr.mxu0 0.0
    %172 = vmatpush1.msra.mxu0 0.0
    %173 = vmatprep.subr.mxu0 0.0
    %174 = vmatpush1.msra.mxu0 0.0
    %175 = vmatprep.subr.mxu0 0.0
    %176 = vmatpush1.msra.mxu0 0.0
    %177 = vmatprep.subr.mxu0 0.0
    %178 = vmatpush1.msra.mxu0 0.0
    %179 = vmatprep.mubr.f32.mxu0 0.0
    %180 = vmatmul.mubr.f32.gmra.mrb[0].mxu0 %v110
    %v181 = vpop.f32.mrb[0].mxu0
    %v182 = vadd.f32 %v106, %v181
    %v183 = vpop.f32.mrb[0].mxu0
    %184 = vmatprep.mubr.f32.mxu0 0.0
    %185 = vmatmul.mubr.f32.gmra.mrb[0].mxu0 %v113
    %v186 = vpop.f32.mrb[0].mxu0
    %v187 = vadd.f32 %v106, %v186
    %v188 = vpop.f32.mrb[0].mxu0
    %189 = vdwg.mxu0
    %v190 = vld [vmem:[#allocation7] sm:$0xff]
    %v191 = vld [vmem:[#allocation8] sm:$0xff]
    %v192 = vld [vmem:[#allocation10] sm:$0xff]
    %v193 = vlaneseq
    %v194 = vshrl.u32 %v193, 7
    %v195 = vlaneseq
    %v196 = vand.u32 %v195, 127
    %v197 = vld [vmem:[%s6] sm:$0xff]
    %vm198 = vcmp.gt.f32.partialorder %v197, 0.5
    %vm199 = vcmp.gt.s32.totalorder %v196, %v194
    %v200 = vsel %vm198, 1, 0
    %201 = vset.pattern.permute.xlu0 0
    %202 = vperm.xlu0 %201, %v200
    %v203 = vpop.permute.xlu0 %202
    %vm204 = vcmp.eq.s32.totalorder %v203, 1
    %vm205 = vmand %vm199, %vm204
    %v206 = vsel %vm205, -1e+09, 0.0
    %v207 = vmul.f32 %v182, %v190
    %209 = vrot.lane.b32.xlu0 %v182, 127
    %v210 = vpop.permute.xlu0 %209
    %212 = vrot.lane.b32.xlu0 %v182, 31
    %v213 = vpop.permute.xlu0 %212
    %vm215 = vcmask 252928
    %v216 = vsel %vm215, %v210, %v213
    %v217 = vmul.f32 %v216, %v191
    %v218 = vadd.f32 %v207, %v217
    %219 = vrot.lane.b32.xlu0 %v182, 97
    %v220 = vpop.permute.xlu0 %219
    %222 = vrot.lane.b32.xlu0 %v182, 1
    %v223 = vpop.permute.xlu0 %222
    %vm225 = vcmask 7168
    %v226 = vsel %vm225, %v220, %v223
    %v227 = vmul.f32 %v226, %v192
    %v228 = vadd.f32 %v218, %v227
    %v229 = vmul.f32 %v228, 0.35355338
    %231 = vrot.lane.b32.xlu0 %v190, 32
    %v232 = vpop.permute.xlu0 %231
    %v234 = vmul.f32 %v182, %v232
    %235 = vrot.lane.b32.xlu0 %v182, 95
    %v236 = vpop.permute.xlu0 %235
    %v238 = vsel %vm215, %v236, %v210
    %v239 = vmul.f32 %v238, %v191
    %241 = vrot.lane.b32.xlu0 %v239, 32
    %v242 = vpop.permute.xlu0 %241
    %v244 = vadd.f32 %v234, %v242
    %245 = vrot.lane.b32.xlu0 %v182, 65
    %v246 = vpop.permute.xlu0 %245
    %v248 = vsel %vm225, %v246, %v220
    %v249 = vmul.f32 %v248, %v192
    %251 = vrot.lane.b32.xlu0 %v249, 32
    %v252 = vpop.permute.xlu0 %251
    %v254 = vadd.f32 %v244, %v252
    %256 = vrot.lane.b32.xlu0 %v254, 96
    %v257 = vpop.permute.xlu0 %256
    %vm258 = vcmask 64512
    %v260 = vsel %vm258, %v229, 0
    %v262 = vsel %vm258, %v257, 0
    %264 = vmatprep.subr.mxu0 0.0
    %265 = vmatpush1.xpose.msra.mxu0 %v262
    %266 = vmatprep.subr.mxu0 0.0
    %267 = vmatpush1.xpose.msra.mxu0 0.0
    %268 = vmatprep.subr.mxu0 0.0
    %269 = vmatpush1.xpose.msra.mxu0 0.0
    %270 = vmatprep.subr.mxu0 0.0
    %271 = vmatpush1.xpose.msra.mxu0 0.0
    %272 = vmatprep.subr.mxu0 0.0
    %273 = vmatpush1.xpose.msra.mxu0 0.0
    %274 = vmatprep.subr.mxu0 0.0
    %275 = vmatpush1.xpose.msra.mxu0 0.0
    %276 = vmatprep.subr.mxu0 0.0
    %277 = vmatpush1.xpose.msra.mxu0 0.0
    %278 = vmatprep.subr.mxu0 0.0
    %279 = vmatpush1.xpose.msra.mxu0 0.0
    %280 = vmatprep.subr.mxu0 0.0
    %281 = vmatpush1.xpose.msra.mxu0 0.0
    %282 = vmatprep.subr.mxu0 0.0
    %283 = vmatpush1.xpose.msra.mxu0 0.0
    %284 = vmatprep.subr.mxu0 0.0
    %285 = vmatpush1.xpose.msra.mxu0 0.0
    %286 = vmatprep.subr.mxu0 0.0
    %287 = vmatpush1.xpose.msra.mxu0 0.0
    %288 = vmatprep.subr.mxu0 0.0
    %289 = vmatpush1.xpose.msra.mxu0 0.0
    %290 = vmatprep.subr.mxu0 0.0
    %291 = vmatpush1.xpose.msra.mxu0 0.0
    %292 = vmatprep.subr.mxu0 0.0
    %293 = vmatpush1.xpose.msra.mxu0 0.0
    %294 = vmatprep.subr.mxu0 0.0
    %295 = vmatpush1.xpose.msra.mxu0 0.0
    %296 = vmatprep.subr.mxu0 0.0
    %297 = vmatpush1.xpose.msra.mxu0 0.0
    %298 = vmatprep.subr.mxu0 0.0
    %299 = vmatpush1.xpose.msra.mxu0 0.0
    %300 = vmatprep.subr.mxu0 0.0
    %301 = vmatpush1.xpose.msra.mxu0 0.0
    %302 = vmatprep.subr.mxu0 0.0
    %303 = vmatpush1.xpose.msra.mxu0 0.0
    %304 = vmatprep.subr.mxu0 0.0
    %305 = vmatpush1.xpose.msra.mxu0 0.0
    %306 = vmatprep.subr.mxu0 0.0
    %307 = vmatpush1.xpose.msra.mxu0 0.0
    %308 = vmatprep.subr.mxu0 0.0
    %309 = vmatpush1.xpose.msra.mxu0 0.0
    %310 = vmatprep.subr.mxu0 0.0
    %311 = vmatpush1.xpose.msra.mxu0 0.0
    %312 = vmatprep.subr.mxu0 0.0
    %313 = vmatpush1.xpose.msra.mxu0 0.0
    %314 = vmatprep.subr.mxu0 0.0
    %315 = vmatpush1.xpose.msra.mxu0 0.0
    %316 = vmatprep.subr.mxu0 0.0
    %317 = vmatpush1.xpose.msra.mxu0 0.0
    %318 = vmatprep.subr.mxu0 0.0
    %319 = vmatpush1.xpose.msra.mxu0 0.0
    %320 = vmatprep.subr.mxu0 0.0
    %321 = vmatpush1.xpose.msra.mxu0 0.0
    %322 = vmatprep.subr.mxu0 0.0
    %323 = vmatpush1.xpose.msra.mxu0 0.0
    %324 = vmatprep.subr.mxu0 0.0
    %325 = vmatpush1.xpose.msra.mxu0 0.0
    %326 = vmatprep.subr.mxu0 0.0
    %327 = vmatpush1.xpose.msra.mxu0 0.0
    %328 = vmatprep.mubr.f32.mxu0 0.0
    %329 = vmatmul.mubr.f32.gmra.mrb[0].mxu0 %v260
    %v330 = vpop.f32.mrb[0].mxu0
    %v331 = vadd.f32 %v206, %v330
    %v332 = vpop.f32.mrb[0].mxu0
    %333 = vdwg.mxu0
    %v334 = vsel %vm258, %v331, -inf
    %335 = vmax.xlane.f32.xlu0 %v334
    %v336 = vpop.xlane.xlu0 %335
    %v337 = vsub.f32 %v331, %v336
    %v338 = vmul.f32 %v337, 1.442695
    %v339 = vpow.pop %v338
    %v340 = vsel %vm258, %v339, 0.0
    %341 = vadd.xlane.f32.xlu0 %v340
    %v342 = vpop.xlane.xlu0 %341
    %v343 = vrcp.pop %v342
    %344 = vrot.lane.b32.xlu0 %v182, 64
    %v345 = vpop.permute.xlu0 %344
    %v348 = vsel %vm258, %v339, 0
    %350 = vmatprep.subr.mxu0 0.0
    %351 = vmatpush1.msra.mxu0 %v345
    %352 = vmatprep.subr.mxu0 0.0
    %353 = vmatpush1.msra.mxu0 0.0
    %354 = vmatprep.subr.mxu0 0.0
    %355 = vmatpush1.msra.mxu0 0.0
    %356 = vmatprep.subr.mxu0 0.0
    %357 = vmatpush1.msra.mxu0 0.0
    %358 = vmatprep.subr.mxu0 0.0
    %359 = vmatpush1.msra.mxu0 0.0
    %360 = vmatprep.subr.mxu0 0.0
    %361 = vmatpush1.msra.mxu0 0.0
    %362 = vmatprep.subr.mxu0 0.0
    %363 = vmatpush1.msra.mxu0 0.0
    %364 = vmatprep.subr.mxu0 0.0
    %365 = vmatpush1.msra.mxu0 0.0
    %366 = vmatprep.subr.mxu0 0.0
    %367 = vmatpush1.msra.mxu0 0.0
    %368 = vmatprep.subr.mxu0 0.0
    %369 = vmatpush1.msra.mxu0 0.0
    %370 = vmatprep.subr.mxu0 0.0
    %371 = vmatpush1.msra.mxu0 0.0
    %372 = vmatprep.subr.mxu0 0.0
    %373 = vmatpush1.msra.mxu0 0.0
    %374 = vmatprep.subr.mxu0 0.0
    %375 = vmatpush1.msra.mxu0 0.0
    %376 = vmatprep.subr.mxu0 0.0
    %377 = vmatpush1.msra.mxu0 0.0
    %378 = vmatprep.subr.mxu0 0.0
    %379 = vmatpush1.msra.mxu0 0.0
    %380 = vmatprep.subr.mxu0 0.0
    %381 = vmatpush1.msra.mxu0 0.0
    %382 = vmatprep.subr.mxu0 0.0
    %383 = vmatpush1.msra.mxu0 0.0
    %384 = vmatprep.subr.mxu0 0.0
    %385 = vmatpush1.msra.mxu0 0.0
    %386 = vmatprep.subr.mxu0 0.0
    %387 = vmatpush1.msra.mxu0 0.0
    %388 = vmatprep.subr.mxu0 0.0
    %389 = vmatpush1.msra.mxu0 0.0
    %390 = vmatprep.subr.mxu0 0.0
    %391 = vmatpush1.msra.mxu0 0.0
    %392 = vmatprep.subr.mxu0 0.0
    %393 = vmatpush1.msra.mxu0 0.0
    %394 = vmatprep.subr.mxu0 0.0
    %395 = vmatpush1.msra.mxu0 0.0
    %396 = vmatprep.subr.mxu0 0.0
    %397 = vmatpush1.msra.mxu0 0.0
    %398 = vmatprep.subr.mxu0 0.0
    %399 = vmatpush1.msra.mxu0 0.0
    %400 = vmatprep.subr.mxu0 0.0
    %401 = vmatpush1.msra.mxu0 0.0
    %402 = vmatprep.subr.mxu0 0.0
    %403 = vmatpush1.msra.mxu0 0.0
    %404 = vmatprep.subr.mxu0 0.0
    %405 = vmatpush1.msra.mxu0 0.0
    %406 = vmatprep.subr.mxu0 0.0
    %407 = vmatpush1.msra.mxu0 0.0
    %408 = vmatprep.subr.mxu0 0.0
    %409 = vmatpush1.msra.mxu0 0.0
    %410 = vmatprep.subr.mxu0 0.0
    %411 = vmatpush1.msra.mxu0 0.0
    %412 = vmatprep.subr.mxu0 0.0
    %413 = vmatpush1.msra.mxu0 0.0
    %414 = vmatprep.mubr.f32.mxu0 0.0
    %415 = vmatmul.mubr.f32.gmra.mrb[0].mxu0 %v348
    %v416 = vpop.f32.mrb[0].mxu0
    %v417 = vadd.f32 0.0, %v416
    %v418 = vpop.f32.mrb[0].mxu0
    %419 = vdwg.mxu0
    %v420 = vmul.f32 %v417, %v343
    %421 = vrot.lane.b32.xlu0 %v229, 120
    %v422 = vpop.permute.xlu0 %421
    %423 = vrot.lane.b32.xlu0 %v254, 88
    %v424 = vpop.permute.xlu0 %423
    %v425 = vsel %vm258, %v422, 0
    %v427 = vsel %vm258, %v424, 0
    %429 = vmatprep.subr.mxu0 0.0
    %430 = vmatpush1.xpose.msra.mxu0 %v427
    %431 = vmatprep.subr.mxu0 0.0
    %432 = vmatpush1.xpose.msra.mxu0 0.0
    %433 = vmatprep.subr.mxu0 0.0
    %434 = vmatpush1.xpose.msra.mxu0 0.0
    %435 = vmatprep.subr.mxu0 0.0
    %436 = vmatpush1.xpose.msra.mxu0 0.0
    %437 = vmatprep.subr.mxu0 0.0
    %438 = vmatpush1.xpose.msra.mxu0 0.0
    %439 = vmatprep.subr.mxu0 0.0
    %440 = vmatpush1.xpose.msra.mxu0 0.0
    %441 = vmatprep.subr.mxu0 0.0
    %442 = vmatpush1.xpose.msra.mxu0 0.0
    %443 = vmatprep.subr.mxu0 0.0
    %444 = vmatpush1.xpose.msra.mxu0 0.0
    %445 = vmatprep.subr.mxu0 0.0
    %446 = vmatpush1.xpose.msra.mxu0 0.0
    %447 = vmatprep.subr.mxu0 0.0
    %448 = vmatpush1.xpose.msra.mxu0 0.0
    %449 = vmatprep.subr.mxu0 0.0
    %450 = vmatpush1.xpose.msra.mxu0 0.0
    %451 = vmatprep.subr.mxu0 0.0
    %452 = vmatpush1.xpose.msra.mxu0 0.0
    %453 = vmatprep.subr.mxu0 0.0
    %454 = vmatpush1.xpose.msra.mxu0 0.0
    %455 = vmatprep.subr.mxu0 0.0
    %456 = vmatpush1.xpose.msra.mxu0 0.0
    %457 = vmatprep.subr.mxu0 0.0
    %458 = vmatpush1.xpose.msra.mxu0 0.0
    %459 = vmatprep.subr.mxu0 0.0
    %460 = vmatpush1.xpose.msra.mxu0 0.0
    %461 = vmatprep.subr.mxu0 0.0
    %462 = vmatpush1.xpose.msra.mxu0 0.0
    %463 = vmatprep.subr.mxu0 0.0
    %464 = vmatpush1.xpose.msra.mxu0 0.0
    %465 = vmatprep.subr.mxu0 0.0
    %466 = vmatpush1.xpose.msra.mxu0 0.0
    %467 = vmatprep.subr.mxu0 0.0
    %468 = vmatpush1.xpose.msra.mxu0 0.0
    %469 = vmatprep.subr.mxu0 0.0
    %470 = vmatpush1.xpose.msra.mxu0 0.0
    %471 = vmatprep.subr.mxu0 0.0
    %472 = vmatpush1.xpose.msra.mxu0 0.0
    %473 = vmatprep.subr.mxu0 0.0
    %474 = vmatpush1.xpose.msra.mxu0 0.0
    %475 = vmatprep.subr.mxu0 0.0
    %476 = vmatpush1.xpose.msra.mxu0 0.0
    %477 = vmatprep.subr.mxu0 0.0
    %478 = vmatpush1.xpose.msra.mxu0 0.0
    %479 = vmatprep.subr.mxu0 0.0
    %480 = vmatpush1.xpose.msra.mxu0 0.0
    %481 = vmatprep.subr.mxu0 0.0
    %482 = vmatpush1.xpose.msra.mxu0 0.0
    %483 = vmatprep.subr.mxu0 0.0
    %484 = vmatpush1.xpose.msra.mxu0 0.0
    %485 = vmatprep.subr.mxu0 0.0
    %486 = vmatpush1.xpose.msra.mxu0 0.0
    %487 = vmatprep.subr.mxu0 0.0
    %488 = vmatpush1.xpose.msra.mxu0 0.0
    %489 = vmatprep.subr.mxu0 0.0
    %490 = vmatpush1.xpose.msra.mxu0 0.0
    %491 = vmatprep.subr.mxu0 0.0
    %492 = vmatpush1.xpose.msra.mxu0 0.0
    %493 = vmatprep.mubr.f32.mxu0 0.0
    %494 = vmatmul.mubr.f32.gmra.mrb[0].mxu0 %v425
    %v495 = vpop.f32.mrb[0].mxu0
    %v496 = vadd.f32 %v206, %v495
    %v497 = vpop.f32.mrb[0].mxu0
    %498 = vdwg.mxu0
    %v499 = vsel %vm258, %v496, -inf
    %500 = vmax.xlane.f32.xlu0 %v499
    %v501 = vpop.xlane.xlu0 %500
    %v502 = vsub.f32 %v496, %v501
    %v503 = vmul.f32 %v502, 1.442695
    %v504 = vpow.pop %v503
    %v505 = vsel %vm258, %v504, 0.0
    %506 = vadd.xlane.f32.xlu0 %v505
    %v507 = vpop.xlane.xlu0 %506
    %v508 = vrcp.pop %v507
    %509 = vrot.lane.b32.xlu0 %v182, 56
    %v510 = vpop.permute.xlu0 %509
    %v513 = vsel %vm258, %v504, 0
    %515 = vmatprep.subr.mxu0 0.0
    %516 = vmatpush1.msra.mxu0 %v510
    %517 = vmatprep.subr.mxu0 0.0
    %518 = vmatpush1.msra.mxu0 0.0
    %519 = vmatprep.subr.mxu0 0.0
    %520 = vmatpush1.msra.mxu0 0.0
    %521 = vmatprep.subr.mxu0 0.0
    %522 = vmatpush1.msra.mxu0 0.0
    %523 = vmatprep.subr.mxu0 0.0
    %524 = vmatpush1.msra.mxu0 0.0
    %525 = vmatprep.subr.mxu0 0.0
    %526 = vmatpush1.msra.mxu0 0.0
    %527 = vmatprep.subr.mxu0 0.0
    %528 = vmatpush1.msra.mxu0 0.0
    %529 = vmatprep.subr.mxu0 0.0
    %530 = vmatpush1.msra.mxu0 0.0
    %531 = vmatprep.subr.mxu0 0.0
    %532 = vmatpush1.msra.mxu0 0.0
    %533 = vmatprep.subr.mxu0 0.0
    %534 = vmatpush1.msra.mxu0 0.0
    %535 = vmatprep.subr.mxu0 0.0
    %536 = vmatpush1.msra.mxu0 0.0
    %537 = vmatprep.subr.mxu0 0.0
    %538 = vmatpush1.msra.mxu0 0.0
    %539 = vmatprep.subr.mxu0 0.0
    %540 = vmatpush1.msra.mxu0 0.0
    %541 = vmatprep.subr.mxu0 0.0
    %542 = vmatpush1.msra.mxu0 0.0
    %543 = vmatprep.subr.mxu0 0.0
    %544 = vmatpush1.msra.mxu0 0.0
    %545 = vmatprep.subr.mxu0 0.0
    %546 = vmatpush1.msra.mxu0 0.0
    %547 = vmatprep.subr.mxu0 0.0
    %548 = vmatpush1.msra.mxu0 0.0
    %549 = vmatprep.subr.mxu0 0.0
    %550 = vmatpush1.msra.mxu0 0.0
    %551 = vmatprep.subr.mxu0 0.0
    %552 = vmatpush1.msra.mxu0 0.0
    %553 = vmatprep.subr.mxu0 0.0
    %554 = vmatpush1.msra.mxu0 0.0
    %555 = vmatprep.subr.mxu0 0.0
    %556 = vmatpush1.msra.mxu0 0.0
    %557 = vmatprep.subr.mxu0 0.0
    %558 = vmatpush1.msra.mxu0 0.0
    %559 = vmatprep.subr.mxu0 0.0
    %560 = vmatpush1.msra.mxu0 0.0
    %561 = vmatprep.subr.mxu0 0.0
    %562 = vmatpush1.msra.mxu0 0.0
    %563 = vmatprep.subr.mxu0 0.0
    %564 = vmatpush1.msra.mxu0 0.0
    %565 = vmatprep.subr.mxu0 0.0
    %566 = vmatpush1.msra.mxu0 0.0
    %567 = vmatprep.subr.mxu0 0.0
    %568 = vmatpush1.msra.mxu0 0.0
    %569 = vmatprep.subr.mxu0 0.0
    %570 = vmatpush1.msra.mxu0 0.0
    %571 = vmatprep.subr.mxu0 0.0
    %572 = vmatpush1.msra.mxu0 0.0
    %573 = vmatprep.subr.mxu0 0.0
    %574 = vmatpush1.msra.mxu0 0.0
    %575 = vmatprep.subr.mxu0 0.0
    %576 = vmatpush1.msra.mxu0 0.0
    %577 = vmatprep.subr.mxu0 0.0
    %578 = vmatpush1.msra.mxu0 0.0
    %579 = vmatprep.mubr.f32.mxu0 0.0
    %580 = vmatmul.mubr.f32.gmra.mrb[0].mxu0 %v513
    %v581 = vpop.f32.mrb[0].mxu0
    %v582 = vadd.f32 0.0, %v581
    %v583 = vpop.f32.mrb[0].mxu0
    %584 = vdwg.mxu0
    %v585 = vmul.f32 %v582, %v508
    %586 = vrot.lane.b32.xlu0 %v229, 112
    %v587 = vpop.permute.xlu0 %586
    %588 = vrot.lane.b32.xlu0 %v254, 80
    %v589 = vpop.permute.xlu0 %588
    %v590 = vsel %vm258, %v587, 0
    %v592 = vsel %vm258, %v589, 0
    %594 = vmatprep.subr.mxu0 0.0
    %595 = vmatpush1.xpose.msra.mxu0 %v592
    %596 = vmatprep.subr.mxu0 0.0
    %597 = vmatpush1.xpose.msra.mxu0 0.0
    %598 = vmatprep.subr.mxu0 0.0
    %599 = vmatpush1.xpose.msra.mxu0 0.0
    %600 = vmatprep.subr.mxu0 0.0
    %601 = vmatpush1.xpose.msra.mxu0 0.0
    %602 = vmatprep.subr.mxu0 0.0
    %603 = vmatpush1.xpose.msra.mxu0 0.0
    %604 = vmatprep.subr.mxu0 0.0
    %605 = vmatpush1.xpose.msra.mxu0 0.0
    %606 = vmatprep.subr.mxu0 0.0
    %607 = vmatpush1.xpose.msra.mxu0 0.0
    %608 = vmatprep.subr.mxu0 0.0
    %609 = vmatpush1.xpose.msra.mxu0 0.0
    %610 = vmatprep.subr.mxu0 0.0
    %611 = vmatpush1.xpose.msra.mxu0 0.0
    %612 = vmatprep.subr.mxu0 0.0
    %613 = vmatpush1.xpose.msra.mxu0 0.0
    %614 = vmatprep.subr.mxu0 0.0
    %615 = vmatpush1.xpose.msra.mxu0 0.0
    %616 = vmatprep.subr.mxu0 0.0
    %617 = vmatpush1.xpose.msra.mxu0 0.0
    %618 = vmatprep.subr.mxu0 0.0
    %619 = vmatpush1.xpose.msra.mxu0 0.0
    %620 = vmatprep.subr.mxu0 0.0
    %621 = vmatpush1.xpose.msra.mxu0 0.0
    %622 = vmatprep.subr.mxu0 0.0
    %623 = vmatpush1.xpose.msra.mxu0 0.0
    %624 = vmatprep.subr.mxu0 0.0
    %625 = vmatpush1.xpose.msra.mxu0 0.0
    %626 = vmatprep.subr.mxu0 0.0
    %627 = vmatpush1.xpose.msra.mxu0 0.0
    %628 = vmatprep.subr.mxu0 0.0
    %629 = vmatpush1.xpose.msra.mxu0 0.0
    %630 = vmatprep.subr.mxu0 0.0
    %631 = vmatpush1.xpose.msra.mxu0 0.0
    %632 = vmatprep.subr.mxu0 0.0
    %633 = vmatpush1.xpose.msra.mxu0 0.0
    %634 = vmatprep.subr.mxu0 0.0
    %635 = vmatpush1.xpose.msra.mxu0 0.0
    %636 = vmatprep.subr.mxu0 0.0
    %637 = vmatpush1.xpose.msra.mxu0 0.0
    %638 = vmatprep.subr.mxu0 0.0
    %639 = vmatpush1.xpose.msra.mxu0 0.0
    %640 = vmatprep.subr.mxu0 0.0
    %641 = vmatpush1.xpose.msra.mxu0 0.0
    %642 = vmatprep.subr.mxu0 0.0
    %643 = vmatpush1.xpose.msra.mxu0 0.0
    %644 = vmatprep.subr.mxu0 0.0
    %645 = vmatpush1.xpose.msra.mxu0 0.0
    %646 = vmatprep.subr.mxu0 0.0
    %647 = vmatpush1.xpose.msra.mxu0 0.0
    %648 = vmatprep.subr.mxu0 0.0
    %649 = vmatpush1.xpose.msra.mxu0 0.0
    %650 = vmatprep.subr.mxu0 0.0
    %651 = vmatpush1.xpose.msra.mxu0 0.0
    %652 = vmatprep.subr.mxu0 0.0
    %653 = vmatpush1.xpose.msra.mxu0 0.0
    %654 = vmatprep.subr.mxu0 0.0
    %655 = vmatpush1.xpose.msra.mxu0 0.0
    %656 = vmatprep.subr.mxu0 0.0
    %657 = vmatpush1.xpose.msra.mxu0 0.0
    %658 = vmatprep.mubr.f32.mxu0 0.0
    %659 = vmatmul.mubr.f32.gmra.mrb[0].mxu0 %v590
    %v660 = vpop.f32.mrb[0].mxu0
    %v661 = vadd.f32 %v206, %v660
    %v662 = vpop.f32.mrb[0].mxu0
    %663 = vdwg.mxu0
    %v664 = vsel %vm258, %v661, -inf
    %665 = vmax.xlane.f32.xlu0 %v664
    %v666 = vpop.xlane.xlu0 %665
    %v667 = vsub.f32 %v661, %v666
    %v668 = vmul.f32 %v667, 1.442695
    %v669 = vpow.pop %v668
    %v670 = vsel %vm258, %v669, 0.0
    %671 = vadd.xlane.f32.xlu0 %v670
    %v672 = vpop.xlane.xlu0 %671
    %v673 = vrcp.pop %v672
    %674 = vrot.lane.b32.xlu0 %v182, 48
    %v675 = vpop.permute.xlu0 %674
    %v678 = vsel %vm258, %v669, 0
    %680 = vmatprep.subr.mxu0 0.0
    %681 = vmatpush1.msra.mxu0 %v675
    %682 = vmatprep.subr.mxu0 0.0
    %683 = vmatpush1.msra.mxu0 0.0
    %684 = vmatprep.subr.mxu0 0.0
    %685 = vmatpush1.msra.mxu0 0.0
    %686 = vmatprep.subr.mxu0 0.0
    %687 = vmatpush1.msra.mxu0 0.0
    %688 = vmatprep.subr.mxu0 0.0
    %689 = vmatpush1.msra.mxu0 0.0
    %690 = vmatprep.subr.mxu0 0.0
    %691 = vmatpush1.msra.mxu0 0.0
    %692 = vmatprep.subr.mxu0 0.0
    %693 = vmatpush1.msra.mxu0 0.0
    %694 = vmatprep.subr.mxu0 0.0
    %695 = vmatpush1.msra.mxu0 0.0
    %696 = vmatprep.subr.mxu0 0.0
    %697 = vmatpush1.msra.mxu0 0.0
    %698 = vmatprep.subr.mxu0 0.0
    %699 = vmatpush1.msra.mxu0 0.0
    %700 = vmatprep.subr.mxu0 0.0
    %701 = vmatpush1.msra.mxu0 0.0
    %702 = vmatprep.subr.mxu0 0.0
    %703 = vmatpush1.msra.mxu0 0.0
    %704 = vmatprep.subr.mxu0 0.0
    %705 = vmatpush1.msra.mxu0 0.0
    %706 = vmatprep.subr.mxu0 0.0
    %707 = vmatpush1.msra.mxu0 0.0
    %708 = vmatprep.subr.mxu0 0.0
    %709 = vmatpush1.msra.mxu0 0.0
    %710 = vmatprep.subr.mxu0 0.0
    %711 = vmatpush1.msra.mxu0 0.0
    %712 = vmatprep.subr.mxu0 0.0
    %713 = vmatpush1.msra.mxu0 0.0
    %714 = vmatprep.subr.mxu0 0.0
    %715 = vmatpush1.msra.mxu0 0.0
    %716 = vmatprep.subr.mxu0 0.0
    %717 = vmatpush1.msra.mxu0 0.0
    %718 = vmatprep.subr.mxu0 0.0
    %719 = vmatpush1.msra.mxu0 0.0
    %720 = vmatprep.subr.mxu0 0.0
    %721 = vmatpush1.msra.mxu0 0.0
    %722 = vmatprep.subr.mxu0 0.0
    %723 = vmatpush1.msra.mxu0 0.0
    %724 = vmatprep.subr.mxu0 0.0
    %725 = vmatpush1.msra.mxu0 0.0
    %726 = vmatprep.subr.mxu0 0.0
    %727 = vmatpush1.msra.mxu0 0.0
    %728 = vmatprep.subr.mxu0 0.0
    %729 = vmatpush1.msra.mxu0 0.0
    %730 = vmatprep.subr.mxu0 0.0
    %731 = vmatpush1.msra.mxu0 0.0
    %732 = vmatprep.subr.mxu0 0.0
    %733 = vmatpush1.msra.mxu0 0.0
    %734 = vmatprep.subr.mxu0 0.0
    %735 = vmatpush1.msra.mxu0 0.0
    %736 = vmatprep.subr.mxu0 0.0
    %737 = vmatpush1.msra.mxu0 0.0
    %738 = vmatprep.subr.mxu0 0.0
    %739 = vmatpush1.msra.mxu0 0.0
    %740 = vmatprep.subr.mxu0 0.0
    %741 = vmatpush1.msra.mxu0 0.0
    %742 = vmatprep.subr.mxu0 0.0
    %743 = vmatpush1.msra.mxu0 0.0
    %744 = vmatprep.mubr.f32.mxu0 0.0
    %745 = vmatmul.mubr.f32.gmra.mrb[0].mxu0 %v678
    %v746 = vpop.f32.mrb[0].mxu0
    %v747 = vadd.f32 0.0, %v746
    %v748 = vpop.f32.mrb[0].mxu0
    %749 = vdwg.mxu0
    %v750 = vmul.f32 %v747, %v673
    %751 = vrot.lane.b32.xlu0 %v229, 104
    %v752 = vpop.permute.xlu0 %751
    %753 = vrot.lane.b32.xlu0 %v254, 72
    %v754 = vpop.permute.xlu0 %753
    %v755 = vsel %vm258, %v752, 0
    %v757 = vsel %vm258, %v754, 0
    %759 = vmatprep.subr.mxu0 0.0
    %760 = vmatpush1.xpose.msra.mxu0 %v757
    %761 = vmatprep.subr.mxu0 0.0
    %762 = vmatpush1.xpose.msra.mxu0 0.0
    %763 = vmatprep.subr.mxu0 0.0
    %764 = vmatpush1.xpose.msra.mxu0 0.0
    %765 = vmatprep.subr.mxu0 0.0
    %766 = vmatpush1.xpose.msra.mxu0 0.0
    %767 = vmatprep.subr.mxu0 0.0
    %768 = vmatpush1.xpose.msra.mxu0 0.0
    %769 = vmatprep.subr.mxu0 0.0
    %770 = vmatpush1.xpose.msra.mxu0 0.0
    %771 = vmatprep.subr.mxu0 0.0
    %772 = vmatpush1.xpose.msra.mxu0 0.0
    %773 = vmatprep.subr.mxu0 0.0
    %774 = vmatpush1.xpose.msra.mxu0 0.0
    %775 = vmatprep.subr.mxu0 0.0
    %776 = vmatpush1.xpose.msra.mxu0 0.0
    %777 = vmatprep.subr.mxu0 0.0
    %778 = vmatpush1.xpose.msra.mxu0 0.0
    %779 = vmatprep.subr.mxu0 0.0
    %780 = vmatpush1.xpose.msra.mxu0 0.0
    %781 = vmatprep.subr.mxu0 0.0
    %782 = vmatpush1.xpose.msra.mxu0 0.0
    %783 = vmatprep.subr.mxu0 0.0
    %784 = vmatpush1.xpose.msra.mxu0 0.0
    %785 = vmatprep.subr.mxu0 0.0
    %786 = vmatpush1.xpose.msra.mxu0 0.0
    %787 = vmatprep.subr.mxu0 0.0
    %788 = vmatpush1.xpose.msra.mxu0 0.0
    %789 = vmatprep.subr.mxu0 0.0
    %790 = vmatpush1.xpose.msra.mxu0 0.0
    %791 = vmatprep.subr.mxu0 0.0
    %792 = vmatpush1.xpose.msra.mxu0 0.0
    %793 = vmatprep.subr.mxu0 0.0
    %794 = vmatpush1.xpose.msra.mxu0 0.0
    %795 = vmatprep.subr.mxu0 0.0
    %796 = vmatpush1.xpose.msra.mxu0 0.0
    %797 = vmatprep.subr.mxu0 0.0
    %798 = vmatpush1.xpose.msra.mxu0 0.0
    %799 = vmatprep.subr.mxu0 0.0
    %800 = vmatpush1.xpose.msra.mxu0 0.0
    %801 = vmatprep.subr.mxu0 0.0
    %802 = vmatpush1.xpose.msra.mxu0 0.0
    %803 = vmatprep.subr.mxu0 0.0
    %804 = vmatpush1.xpose.msra.mxu0 0.0
    %805 = vmatprep.subr.mxu0 0.0
    %806 = vmatpush1.xpose.msra.mxu0 0.0
    %807 = vmatprep.subr.mxu0 0.0
    %808 = vmatpush1.xpose.msra.mxu0 0.0
    %809 = vmatprep.subr.mxu0 0.0
    %810 = vmatpush1.xpose.msra.mxu0 0.0
    %811 = vmatprep.subr.mxu0 0.0
    %812 = vmatpush1.xpose.msra.mxu0 0.0
    %813 = vmatprep.subr.mxu0 0.0
    %814 = vmatpush1.xpose.msra.mxu0 0.0
    %815 = vmatprep.subr.mxu0 0.0
    %816 = vmatpush1.xpose.msra.mxu0 0.0
    %817 = vmatprep.subr.mxu0 0.0
    %818 = vmatpush1.xpose.msra.mxu0 0.0
    %819 = vmatprep.subr.mxu0 0.0
    %820 = vmatpush1.xpose.msra.mxu0 0.0
    %821 = vmatprep.subr.mxu0 0.0
    %822 = vmatpush1.xpose.msra.mxu0 0.0
    %823 = vmatprep.mubr.f32.mxu0 0.0
    %824 = vmatmul.mubr.f32.gmra.mrb[0].mxu0 %v755
    %v825 = vpop.f32.mrb[0].mxu0
    %v826 = vadd.f32 %v206, %v825
    %v827 = vpop.f32.mrb[0].mxu0
    %828 = vdwg.mxu0
    %v829 = vsel %vm258, %v826, -inf
    %830 = vmax.xlane.f32.xlu0 %v829
    %v831 = vpop.xlane.xlu0 %830
    %v832 = vsub.f32 %v826, %v831
    %v833 = vmul.f32 %v832, 1.442695
    %v834 = vpow.pop %v833
    %v835 = vsel %vm258, %v834, 0.0
    %836 = vadd.xlane.f32.xlu0 %v835
    %v837 = vpop.xlane.xlu0 %836
    %v838 = vrcp.pop %v837
    %839 = vrot.lane.b32.xlu0 %v182, 40
    %v840 = vpop.permute.xlu0 %839
    %v843 = vsel %vm258, %v834, 0
    %845 = vmatprep.subr.mxu0 0.0
    %846 = vmatpush1.msra.mxu0 %v840
    %847 = vmatprep.subr.mxu0 0.0
    %848 = vmatpush1.msra.mxu0 0.0
    %849 = vmatprep.subr.mxu0 0.0
    %850 = vmatpush1.msra.mxu0 0.0
    %851 = vmatprep.subr.mxu0 0.0
    %852 = vmatpush1.msra.mxu0 0.0
    %853 = vmatprep.subr.mxu0 0.0
    %854 = vmatpush1.msra.mxu0 0.0
    %855 = vmatprep.subr.mxu0 0.0
    %856 = vmatpush1.msra.mxu0 0.0
    %857 = vmatprep.subr.mxu0 0.0
    %858 = vmatpush1.msra.mxu0 0.0
    %859 = vmatprep.subr.mxu0 0.0
    %860 = vmatpush1.msra.mxu0 0.0
    %861 = vmatprep.subr.mxu0 0.0
    %862 = vmatpush1.msra.mxu0 0.0
    %863 = vmatprep.subr.mxu0 0.0
    %864 = vmatpush1.msra.mxu0 0.0
    %865 = vmatprep.subr.mxu0 0.0
    %866 = vmatpush1.msra.mxu0 0.0
    %867 = vmatprep.subr.mxu0 0.0
    %868 = vmatpush1.msra.mxu0 0.0
    %869 = vmatprep.subr.mxu0 0.0
    %870 = vmatpush1.msra.mxu0 0.0
    %871 = vmatprep.subr.mxu0 0.0
    %872 = vmatpush1.msra.mxu0 0.0
    %873 = vmatprep.subr.mxu0 0.0
    %874 = vmatpush1.msra.mxu0 0.0
    %875 = vmatprep.subr.mxu0 0.0
    %876 = vmatpush1.msra.mxu0 0.0
    %877 = vmatprep.subr.mxu0 0.0
    %878 = vmatpush1.msra.mxu0 0.0
    %879 = vmatprep.subr.mxu0 0.0
    %880 = vmatpush1.msra.mxu0 0.0
    %881 = vmatprep.subr.mxu0 0.0
    %882 = vmatpush1.msra.mxu0 0.0
    %883 = vmatprep.subr.mxu0 0.0
    %884 = vmatpush1.msra.mxu0 0.0
    %885 = vmatprep.subr.mxu0 0.0
    %886 = vmatpush1.msra.mxu0 0.0
    %887 = vmatprep.subr.mxu0 0.0
    %888 = vmatpush1.msra.mxu0 0.0
    %889 = vmatprep.subr.mxu0 0.0
    %890 = vmatpush1.msra.mxu0 0.0
    %891 = vmatprep.subr.mxu0 0.0
    %892 = vmatpush1.msra.mxu0 0.0
    %893 = vmatprep.subr.mxu0 0.0
    %894 = vmatpush1.msra.mxu0 0.0
    %895 = vmatprep.subr.mxu0 0.0
    %896 = vmatpush1.msra.mxu0 0.0
    %897 = vmatprep.subr.mxu0 0.0
    %898 = vmatpush1.msra.mxu0 0.0
    %899 = vmatprep.subr.mxu0 0.0
    %900 = vmatpush1.msra.mxu0 0.0
    %901 = vmatprep.subr.mxu0 0.0
    %902 = vmatpush1.msra.mxu0 0.0
    %903 = vmatprep.subr.mxu0 0.0
    %904 = vmatpush1.msra.mxu0 0.0
    %905 = vmatprep.subr.mxu0 0.0
    %906 = vmatpush1.msra.mxu0 0.0
    %907 = vmatprep.subr.mxu0 0.0
    %908 = vmatpush1.msra.mxu0 0.0
    %909 = vmatprep.mubr.f32.mxu0 0.0
    %910 = vmatmul.mubr.f32.gmra.mrb[0].mxu0 %v843
    %v911 = vpop.f32.mrb[0].mxu0
    %v912 = vadd.f32 0.0, %v911
    %v913 = vpop.f32.mrb[0].mxu0
    %914 = vdwg.mxu0
    %v915 = vmul.f32 %v912, %v838
    %917 = vrot.lane.b32.xlu0 %v585, 8
    %v918 = vpop.permute.xlu0 %917
    %921 = vrot.lane.b32.xlu0 %v750, 16
    %v922 = vpop.permute.xlu0 %921
    %925 = vrot.lane.b32.xlu0 %v915, 24
    %v926 = vpop.permute.xlu0 %925
    %v928 = vsel %vm258, %v420, %v918
    %vm929 = vcmask 130048
    %v930 = vsel %vm929, %v928, %v922
    %vm931 = vcmask 195584
    %v932 = vsel %vm931, %v930, %v926
    %v933 = vmul.f32 %v187, %v190
    %935 = vrot.lane.b32.xlu0 %v187, 127
    %v936 = vpop.permute.xlu0 %935
    %938 = vrot.lane.b32.xlu0 %v187, 31
    %v939 = vpop.permute.xlu0 %938
    %v941 = vsel %vm215, %v936, %v939
    %v942 = vmul.f32 %v941, %v191
    %v943 = vadd.f32 %v933, %v942
    %944 = vrot.lane.b32.xlu0 %v187, 97
    %v945 = vpop.permute.xlu0 %944
    %947 = vrot.lane.b32.xlu0 %v187, 1
    %v948 = vpop.permute.xlu0 %947
    %v950 = vsel %vm225, %v945, %v948
    %v951 = vmul.f32 %v950, %v192
    %v952 = vadd.f32 %v943, %v951
    %v953 = vmul.f32 %v952, 0.35355338
    %v954 = vmul.f32 %v187, %v232
    %955 = vrot.lane.b32.xlu0 %v187, 95
    %v956 = vpop.permute.xlu0 %955
    %v958 = vsel %vm215, %v956, %v936
    %v959 = vmul.f32 %v958, %v191
    %961 = vrot.lane.b32.xlu0 %v959, 32
    %v962 = vpop.permute.xlu0 %961
    %v964 = vadd.f32 %v954, %v962
    %965 = vrot.lane.b32.xlu0 %v187, 65
    %v966 = vpop.permute.xlu0 %965
    %v968 = vsel %vm225, %v966, %v945
    %v969 = vmul.f32 %v968, %v192
    %971 = vrot.lane.b32.xlu0 %v969, 32
    %v972 = vpop.permute.xlu0 %971
    %v974 = vadd.f32 %v964, %v972
    %976 = vrot.lane.b32.xlu0 %v974, 96
    %v977 = vpop.permute.xlu0 %976
    %v979 = vsel %vm258, %v953, 0
    %v981 = vsel %vm258, %v977, 0
    %983 = vmatprep.subr.mxu0 0.0
    %984 = vmatpush1.xpose.msra.mxu0 %v981
    %985 = vmatprep.subr.mxu0 0.0
    %986 = vmatpush1.xpose.msra.mxu0 0.0
    %987 = vmatprep.subr.mxu0 0.0
    %988 = vmatpush1.xpose.msra.mxu0 0.0
    %989 = vmatprep.subr.mxu0 0.0
    %990 = vmatpush1.xpose.msra.mxu0 0.0
    %991 = vmatprep.subr.mxu0 0.0
    %992 = vmatpush1.xpose.msra.mxu0 0.0
    %993 = vmatprep.subr.mxu0 0.0
    %994 = vmatpush1.xpose.msra.mxu0 0.0
    %995 = vmatprep.subr.mxu0 0.0
    %996 = vmatpush1.xpose.msra.mxu0 0.0
    %997 = vmatprep.subr.mxu0 0.0
    %998 = vmatpush1.xpose.msra.mxu0 0.0
    %999 = vmatprep.subr.mxu0 0.0
    %1000 = vmatpush1.xpose.msra.mxu0 0.0
    %1001 = vmatprep.subr.mxu0 0.0
    %1002 = vmatpush1.xpose.msra.mxu0 0.0
    %1003 = vmatprep.subr.mxu0 0.0
    %1004 = vmatpush1.xpose.msra.mxu0 0.0
    %1005 = vmatprep.subr.mxu0 0.0
    %1006 = vmatpush1.xpose.msra.mxu0 0.0
    %1007 = vmatprep.subr.mxu0 0.0
    %1008 = vmatpush1.xpose.msra.mxu0 0.0
    %1009 = vmatprep.subr.mxu0 0.0
    %1010 = vmatpush1.xpose.msra.mxu0 0.0
    %1011 = vmatprep.subr.mxu0 0.0
    %1012 = vmatpush1.xpose.msra.mxu0 0.0
    %1013 = vmatprep.subr.mxu0 0.0
    %1014 = vmatpush1.xpose.msra.mxu0 0.0
    %1015 = vmatprep.subr.mxu0 0.0
    %1016 = vmatpush1.xpose.msra.mxu0 0.0
    %1017 = vmatprep.subr.mxu0 0.0
    %1018 = vmatpush1.xpose.msra.mxu0 0.0
    %1019 = vmatprep.subr.mxu0 0.0
    %1020 = vmatpush1.xpose.msra.mxu0 0.0
    %1021 = vmatprep.subr.mxu0 0.0
    %1022 = vmatpush1.xpose.msra.mxu0 0.0
    %1023 = vmatprep.subr.mxu0 0.0
    %1024 = vmatpush1.xpose.msra.mxu0 0.0
    %1025 = vmatprep.subr.mxu0 0.0
    %1026 = vmatpush1.xpose.msra.mxu0 0.0
    %1027 = vmatprep.subr.mxu0 0.0
    %1028 = vmatpush1.xpose.msra.mxu0 0.0
    %1029 = vmatprep.subr.mxu0 0.0
    %1030 = vmatpush1.xpose.msra.mxu0 0.0
    %1031 = vmatprep.subr.mxu0 0.0
    %1032 = vmatpush1.xpose.msra.mxu0 0.0
    %1033 = vmatprep.subr.mxu0 0.0
    %1034 = vmatpush1.xpose.msra.mxu0 0.0
    %1035 = vmatprep.subr.mxu0 0.0
    %1036 = vmatpush1.xpose.msra.mxu0 0.0
    %1037 = vmatprep.subr.mxu0 0.0
    %1038 = vmatpush1.xpose.msra.mxu0 0.0
    %1039 = vmatprep.subr.mxu0 0.0
    %1040 = vmatpush1.xpose.msra.mxu0 0.0
    %1041 = vmatprep.subr.mxu0 0.0
    %1042 = vmatpush1.xpose.msra.mxu0 0.0
    %1043 = vmatprep.subr.mxu0 0.0
    %1044 = vmatpush1.xpose.msra.mxu0 0.0
    %1045 = vmatprep.subr.mxu0 0.0
    %1046 = vmatpush1.xpose.msra.mxu0 0.0
    %1047 = vmatprep.mubr.f32.mxu0 0.0
    %1048 = vmatmul.mubr.f32.gmra.mrb[0].mxu0 %v979
    %v1049 = vpop.f32.mrb[0].mxu0
    %v1050 = vadd.f32 %v206, %v1049
    %v1051 = vpop.f32.mrb[0].mxu0
    %1052 = vdwg.mxu0
    %v1053 = vsel %vm258, %v1050, -inf
    %1054 = vmax.xlane.f32.xlu0 %v1053
    %v1055 = vpop.xlane.xlu0 %1054
    %v1056 = vsub.f32 %v1050, %v1055
    %v1057 = vmul.f32 %v1056, 1.442695
    %v1058 = vpow.pop %v1057
    %v1059 = vsel %vm258, %v1058, 0.0
    %1060 = vadd.xlane.f32.xlu0 %v1059
    %v1061 = vpop.xlane.xlu0 %1060
    %v1062 = vrcp.pop %v1061
    %1063 = vrot.lane.b32.xlu0 %v187, 64
    %v1064 = vpop.permute.xlu0 %1063
    %v1067 = vsel %vm258, %v1058, 0
    %1069 = vmatprep.subr.mxu0 0.0
    %1070 = vmatpush1.msra.mxu0 %v1064
    %1071 = vmatprep.subr.mxu0 0.0
    %1072 = vmatpush1.msra.mxu0 0.0
    %1073 = vmatprep.subr.mxu0 0.0
    %1074 = vmatpush1.msra.mxu0 0.0
    %1075 = vmatprep.subr.mxu0 0.0
    %1076 = vmatpush1.msra.mxu0 0.0
    %1077 = vmatprep.subr.mxu0 0.0
    %1078 = vmatpush1.msra.mxu0 0.0
    %1079 = vmatprep.subr.mxu0 0.0
    %1080 = vmatpush1.msra.mxu0 0.0
    %1081 = vmatprep.subr.mxu0 0.0
    %1082 = vmatpush1.msra.mxu0 0.0
    %1083 = vmatprep.subr.mxu0 0.0
    %1084 = vmatpush1.msra.mxu0 0.0
    %1085 = vmatprep.subr.mxu0 0.0
    %1086 = vmatpush1.msra.mxu0 0.0
    %1087 = vmatprep.subr.mxu0 0.0
    %1088 = vmatpush1.msra.mxu0 0.0
    %1089 = vmatprep.subr.mxu0 0.0
    %1090 = vmatpush1.msra.mxu0 0.0
    %1091 = vmatprep.subr.mxu0 0.0
    %1092 = vmatpush1.msra.mxu0 0.0
    %1093 = vmatprep.subr.mxu0 0.0
    %1094 = vmatpush1.msra.mxu0 0.0
    %1095 = vmatprep.subr.mxu0 0.0
    %1096 = vmatpush1.msra.mxu0 0.0
    %1097 = vmatprep.subr.mxu0 0.0
    %1098 = vmatpush1.msra.mxu0 0.0
    %1099 = vmatprep.subr.mxu0 0.0
    %1100 = vmatpush1.msra.mxu0 0.0
    %1101 = vmatprep.subr.mxu0 0.0
    %1102 = vmatpush1.msra.mxu0 0.0
    %1103 = vmatprep.subr.mxu0 0.0
    %1104 = vmatpush1.msra.mxu0 0.0
    %1105 = vmatprep.subr.mxu0 0.0
    %1106 = vmatpush1.msra.mxu0 0.0
    %1107 = vmatprep.subr.mxu0 0.0
    %1108 = vmatpush1.msra.mxu0 0.0
    %1109 = vmatprep.subr.mxu0 0.0
    %1110 = vmatpush1.msra.mxu0 0.0
    %1111 = vmatprep.subr.mxu0 0.0
    %1112 = vmatpush1.msra.mxu0 0.0
    %1113 = vmatprep.subr.mxu0 0.0
    %1114 = vmatpush1.msra.mxu0 0.0
    %1115 = vmatprep.subr.mxu0 0.0
    %1116 = vmatpush1.msra.mxu0 0.0
    %1117 = vmatprep.subr.mxu0 0.0
    %1118 = vmatpush1.msra.mxu0 0.0
    %1119 = vmatprep.subr.mxu0 0.0
    %1120 = vmatpush1.msra.mxu0 0.0
    %1121 = vmatprep.subr.mxu0 0.0
    %1122 = vmatpush1.msra.mxu0 0.0
    %1123 = vmatprep.subr.mxu0 0.0
    %1124 = vmatpush1.msra.mxu0 0.0
    %1125 = vmatprep.subr.mxu0 0.0
    %1126 = vmatpush1.msra.mxu0 0.0
    %1127 = vmatprep.subr.mxu0 0.0
    %1128 = vmatpush1.msra.mxu0 0.0
    %1129 = vmatprep.subr.mxu0 0.0
    %1130 = vmatpush1.msra.mxu0 0.0
    %1131 = vmatprep.subr.mxu0 0.0
    %1132 = vmatpush1.msra.mxu0 0.0
    %1133 = vmatprep.mubr.f32.mxu0 0.0
    %1134 = vmatmul.mubr.f32.gmra.mrb[0].mxu0 %v1067
    %v1135 = vpop.f32.mrb[0].mxu0
    %v1136 = vadd.f32 0.0, %v1135
    %v1137 = vpop.f32.mrb[0].mxu0
    %1138 = vdwg.mxu0
    %v1139 = vmul.f32 %v1136, %v1062
    %1140 = vrot.lane.b32.xlu0 %v953, 120
    %v1141 = vpop.permute.xlu0 %1140
    %1142 = vrot.lane.b32.xlu0 %v974, 88
    %v1143 = vpop.permute.xlu0 %1142
    %v1144 = vsel %vm258, %v1141, 0
    %v1146 = vsel %vm258, %v1143, 0
    %1148 = vmatprep.subr.mxu0 0.0
    %1149 = vmatpush1.xpose.msra.mxu0 %v1146
    %1150 = vmatprep.subr.mxu0 0.0
    %1151 = vmatpush1.xpose.msra.mxu0 0.0
    %1152 = vmatprep.subr.mxu0 0.0
    %1153 = vmatpush1.xpose.msra.mxu0 0.0
    %1154 = vmatprep.subr.mxu0 0.0
    %1155 = vmatpush1.xpose.msra.mxu0 0.0
    %1156 = vmatprep.subr.mxu0 0.0
    %1157 = vmatpush1.xpose.msra.mxu0 0.0
    %1158 = vmatprep.subr.mxu0 0.0
    %1159 = vmatpush1.xpose.msra.mxu0 0.0
    %1160 = vmatprep.subr.mxu0 0.0
    %1161 = vmatpush1.xpose.msra.mxu0 0.0
    %1162 = vmatprep.subr.mxu0 0.0
    %1163 = vmatpush1.xpose.msra.mxu0 0.0
    %1164 = vmatprep.subr.mxu0 0.0
    %1165 = vmatpush1.xpose.msra.mxu0 0.0
    %1166 = vmatprep.subr.mxu0 0.0
    %1167 = vmatpush1.xpose.msra.mxu0 0.0
    %1168 = vmatprep.subr.mxu0 0.0
    %1169 = vmatpush1.xpose.msra.mxu0 0.0
    %1170 = vmatprep.subr.mxu0 0.0
    %1171 = vmatpush1.xpose.msra.mxu0 0.0
    %1172 = vmatprep.subr.mxu0 0.0
    %1173 = vmatpush1.xpose.msra.mxu0 0.0
    %1174 = vmatprep.subr.mxu0 0.0
    %1175 = vmatpush1.xpose.msra.mxu0 0.0
    %1176 = vmatprep.subr.mxu0 0.0
    %1177 = vmatpush1.xpose.msra.mxu0 0.0
    %1178 = vmatprep.subr.mxu0 0.0
    %1179 = vmatpush1.xpose.msra.mxu0 0.0
    %1180 = vmatprep.subr.mxu0 0.0
    %1181 = vmatpush1.xpose.msra.mxu0 0.0
    %1182 = vmatprep.subr.mxu0 0.0
    %1183 = vmatpush1.xpose.msra.mxu0 0.0
    %1184 = vmatprep.subr.mxu0 0.0
    %1185 = vmatpush1.xpose.msra.mxu0 0.0
    %1186 = vmatprep.subr.mxu0 0.0
    %1187 = vmatpush1.xpose.msra.mxu0 0.0
    %1188 = vmatprep.subr.mxu0 0.0
    %1189 = vmatpush1.xpose.msra.mxu0 0.0
    %1190 = vmatprep.subr.mxu0 0.0
    %1191 = vmatpush1.xpose.msra.mxu0 0.0
    %1192 = vmatprep.subr.mxu0 0.0
    %1193 = vmatpush1.xpose.msra.mxu0 0.0
    %1194 = vmatprep.subr.mxu0 0.0
    %1195 = vmatpush1.xpose.msra.mxu0 0.0
    %1196 = vmatprep.subr.mxu0 0.0
    %1197 = vmatpush1.xpose.msra.mxu0 0.0
    %1198 = vmatprep.subr.mxu0 0.0
    %1199 = vmatpush1.xpose.msra.mxu0 0.0
    %1200 = vmatprep.subr.mxu0 0.0
    %1201 = vmatpush1.xpose.msra.mxu0 0.0
    %1202 = vmatprep.subr.mxu0 0.0
    %1203 = vmatpush1.xpose.msra.mxu0 0.0
    %1204 = vmatprep.subr.mxu0 0.0
    %1205 = vmatpush1.xpose.msra.mxu0 0.0
    %1206 = vmatprep.subr.mxu0 0.0
    %1207 = vmatpush1.xpose.msra.mxu0 0.0
    %1208 = vmatprep.subr.mxu0 0.0
    %1209 = vmatpush1.xpose.msra.mxu0 0.0
    %1210 = vmatprep.subr.mxu0 0.0
    %1211 = vmatpush1.xpose.msra.mxu0 0.0
    %1212 = vmatprep.mubr.f32.mxu0 0.0
    %1213 = vmatmul.mubr.f32.gmra.mrb[0].mxu0 %v1144
    %v1214 = vpop.f32.mrb[0].mxu0
    %v1215 = vadd.f32 %v206, %v1214
    %v1216 = vpop.f32.mrb[0].mxu0
    %1217 = vdwg.mxu0
    %v1218 = vsel %vm258, %v1215, -inf
    %1219 = vmax.xlane.f32.xlu0 %v1218
    %v1220 = vpop.xlane.xlu0 %1219
    %v1221 = vsub.f32 %v1215, %v1220
    %v1222 = vmul.f32 %v1221, 1.442695
    %v1223 = vpow.pop %v1222
    %v1224 = vsel %vm258, %v1223, 0.0
    %1225 = vadd.xlane.f32.xlu0 %v1224
    %v1226 = vpop.xlane.xlu0 %1225
    %v1227 = vrcp.pop %v1226
    %1228 = vrot.lane.b32.xlu0 %v187, 56
    %v1229 = vpop.permute.xlu0 %1228
    %v1232 = vsel %vm258, %v1223, 0
    %1234 = vmatprep.subr.mxu0 0.0
    %1235 = vmatpush1.msra.mxu0 %v1229
    %1236 = vmatprep.subr.mxu0 0.0
    %1237 = vmatpush1.msra.mxu0 0.0
    %1238 = vmatprep.subr.mxu0 0.0
    %1239 = vmatpush1.msra.mxu0 0.0
    %1240 = vmatprep.subr.mxu0 0.0
    %1241 = vmatpush1.msra.mxu0 0.0
    %1242 = vmatprep.subr.mxu0 0.0
    %1243 = vmatpush1.msra.mxu0 0.0
    %1244 = vmatprep.subr.mxu0 0.0
    %1245 = vmatpush1.msra.mxu0 0.0
    %1246 = vmatprep.subr.mxu0 0.0
    %1247 = vmatpush1.msra.mxu0 0.0
    %1248 = vmatprep.subr.mxu0 0.0
    %1249 = vmatpush1.msra.mxu0 0.0
    %1250 = vmatprep.subr.mxu0 0.0
    %1251 = vmatpush1.msra.mxu0 0.0
    %1252 = vmatprep.subr.mxu0 0.0
    %1253 = vmatpush1.msra.mxu0 0.0
    %1254 = vmatprep.subr.mxu0 0.0
    %1255 = vmatpush1.msra.mxu0 0.0
    %1256 = vmatprep.subr.mxu0 0.0
    %1257 = vmatpush1.msra.mxu0 0.0
    %1258 = vmatprep.subr.mxu0 0.0
    %1259 = vmatpush1.msra.mxu0 0.0
    %1260 = vmatprep.subr.mxu0 0.0
    %1261 = vmatpush1.msra.mxu0 0.0
    %1262 = vmatprep.subr.mxu0 0.0
    %1263 = vmatpush1.msra.mxu0 0.0
    %1264 = vmatprep.subr.mxu0 0.0
    %1265 = vmatpush1.msra.mxu0 0.0
    %1266 = vmatprep.subr.mxu0 0.0
    %1267 = vmatpush1.msra.mxu0 0.0
    %1268 = vmatprep.subr.mxu0 0.0
    %1269 = vmatpush1.msra.mxu0 0.0
    %1270 = vmatprep.subr.mxu0 0.0
    %1271 = vmatpush1.msra.mxu0 0.0
    %1272 = vmatprep.subr.mxu0 0.0
    %1273 = vmatpush1.msra.mxu0 0.0
    %1274 = vmatprep.subr.mxu0 0.0
    %1275 = vmatpush1.msra.mxu0 0.0
    %1276 = vmatprep.subr.mxu0 0.0
    %1277 = vmatpush1.msra.mxu0 0.0
    %1278 = vmatprep.subr.mxu0 0.0
    %1279 = vmatpush1.msra.mxu0 0.0
    %1280 = vmatprep.subr.mxu0 0.0
    %1281 = vmatpush1.msra.mxu0 0.0
    %1282 = vmatprep.subr.mxu0 0.0
    %1283 = vmatpush1.msra.mxu0 0.0
    %1284 = vmatprep.subr.mxu0 0.0
    %1285 = vmatpush1.msra.mxu0 0.0
    %1286 = vmatprep.subr.mxu0 0.0
    %1287 = vmatpush1.msra.mxu0 0.0
    %1288 = vmatprep.subr.mxu0 0.0
    %1289 = vmatpush1.msra.mxu0 0.0
    %1290 = vmatprep.subr.mxu0 0.0
    %1291 = vmatpush1.msra.mxu0 0.0
    %1292 = vmatprep.subr.mxu0 0.0
    %1293 = vmatpush1.msra.mxu0 0.0
    %1294 = vmatprep.subr.mxu0 0.0
    %1295 = vmatpush1.msra.mxu0 0.0
    %1296 = vmatprep.subr.mxu0 0.0
    %1297 = vmatpush1.msra.mxu0 0.0
    %1298 = vmatprep.mubr.f32.mxu0 0.0
    %1299 = vmatmul.mubr.f32.gmra.mrb[0].mxu0 %v1232
    %v1300 = vpop.f32.mrb[0].mxu0
    %v1301 = vadd.f32 0.0, %v1300
    %v1302 = vpop.f32.mrb[0].mxu0
    %1303 = vdwg.mxu0
    %v1304 = vmul.f32 %v1301, %v1227
    %1305 = vrot.lane.b32.xlu0 %v953, 112
    %v1306 = vpop.permute.xlu0 %1305
    %1307 = vrot.lane.b32.xlu0 %v974, 80
    %v1308 = vpop.permute.xlu0 %1307
    %v1309 = vsel %vm258, %v1306, 0
    %v1311 = vsel %vm258, %v1308, 0
    %1313 = vmatprep.subr.mxu0 0.0
    %1314 = vmatpush1.xpose.msra.mxu0 %v1311
    %1315 = vmatprep.subr.mxu0 0.0
    %1316 = vmatpush1.xpose.msra.mxu0 0.0
    %1317 = vmatprep.subr.mxu0 0.0
    %1318 = vmatpush1.xpose.msra.mxu0 0.0
    %1319 = vmatprep.subr.mxu0 0.0
    %1320 = vmatpush1.xpose.msra.mxu0 0.0
    %1321 = vmatprep.subr.mxu0 0.0
    %1322 = vmatpush1.xpose.msra.mxu0 0.0
    %1323 = vmatprep.subr.mxu0 0.0
    %1324 = vmatpush1.xpose.msra.mxu0 0.0
    %1325 = vmatprep.subr.mxu0 0.0
    %1326 = vmatpush1.xpose.msra.mxu0 0.0
    %1327 = vmatprep.subr.mxu0 0.0
    %1328 = vmatpush1.xpose.msra.mxu0 0.0
    %1329 = vmatprep.subr.mxu0 0.0
    %1330 = vmatpush1.xpose.msra.mxu0 0.0
    %1331 = vmatprep.subr.mxu0 0.0
    %1332 = vmatpush1.xpose.msra.mxu0 0.0
    %1333 = vmatprep.subr.mxu0 0.0
    %1334 = vmatpush1.xpose.msra.mxu0 0.0
    %1335 = vmatprep.subr.mxu0 0.0
    %1336 = vmatpush1.xpose.msra.mxu0 0.0
    %1337 = vmatprep.subr.mxu0 0.0
    %1338 = vmatpush1.xpose.msra.mxu0 0.0
    %1339 = vmatprep.subr.mxu0 0.0
    %1340 = vmatpush1.xpose.msra.mxu0 0.0
    %1341 = vmatprep.subr.mxu0 0.0
    %1342 = vmatpush1.xpose.msra.mxu0 0.0
    %1343 = vmatprep.subr.mxu0 0.0
    %1344 = vmatpush1.xpose.msra.mxu0 0.0
    %1345 = vmatprep.subr.mxu0 0.0
    %1346 = vmatpush1.xpose.msra.mxu0 0.0
    %1347 = vmatprep.subr.mxu0 0.0
    %1348 = vmatpush1.xpose.msra.mxu0 0.0
    %1349 = vmatprep.subr.mxu0 0.0
    %1350 = vmatpush1.xpose.msra.mxu0 0.0
    %1351 = vmatprep.subr.mxu0 0.0
    %1352 = vmatpush1.xpose.msra.mxu0 0.0
    %1353 = vmatprep.subr.mxu0 0.0
    %1354 = vmatpush1.xpose.msra.mxu0 0.0
    %1355 = vmatprep.subr.mxu0 0.0
    %1356 = vmatpush1.xpose.msra.mxu0 0.0
    %1357 = vmatprep.subr.mxu0 0.0
    %1358 = vmatpush1.xpose.msra.mxu0 0.0
    %1359 = vmatprep.subr.mxu0 0.0
    %1360 = vmatpush1.xpose.msra.mxu0 0.0
    %1361 = vmatprep.subr.mxu0 0.0
    %1362 = vmatpush1.xpose.msra.mxu0 0.0
    %1363 = vmatprep.subr.mxu0 0.0
    %1364 = vmatpush1.xpose.msra.mxu0 0.0
    %1365 = vmatprep.subr.mxu0 0.0
    %1366 = vmatpush1.xpose.msra.mxu0 0.0
    %1367 = vmatprep.subr.mxu0 0.0
    %1368 = vmatpush1.xpose.msra.mxu0 0.0
    %1369 = vmatprep.subr.mxu0 0.0
    %1370 = vmatpush1.xpose.msra.mxu0 0.0
    %1371 = vmatprep.subr.mxu0 0.0
    %1372 = vmatpush1.xpose.msra.mxu0 0.0
    %1373 = vmatprep.subr.mxu0 0.0
    %1374 = vmatpush1.xpose.msra.mxu0 0.0
    %1375 = vmatprep.subr.mxu0 0.0
    %1376 = vmatpush1.xpose.msra.mxu0 0.0
    %1377 = vmatprep.mubr.f32.mxu0 0.0
    %1378 = vmatmul.mubr.f32.gmra.mrb[0].mxu0 %v1309
    %v1379 = vpop.f32.mrb[0].mxu0
    %v1380 = vadd.f32 %v206, %v1379
    %v1381 = vpop.f32.mrb[0].mxu0
    %1382 = vdwg.mxu0
    %v1383 = vsel %vm258, %v1380, -inf
    %1384 = vmax.xlane.f32.xlu0 %v1383
    %v1385 = vpop.xlane.xlu0 %1384
    %v1386 = vsub.f32 %v1380, %v1385
    %v1387 = vmul.f32 %v1386, 1.442695
    %v1388 = vpow.pop %v1387
    %v1389 = vsel %vm258, %v1388, 0.0
    %1390 = vadd.xlane.f32.xlu0 %v1389
    %v1391 = vpop.xlane.xlu0 %1390
    %v1392 = vrcp.pop %v1391
    %1393 = vrot.lane.b32.xlu0 %v187, 48
    %v1394 = vpop.permute.xlu0 %1393
    %v1397 = vsel %vm258, %v1388, 0
    %1399 = vmatprep.subr.mxu0 0.0
    %1400 = vmatpush1.msra.mxu0 %v1394
    %1401 = vmatprep.subr.mxu0 0.0
    %1402 = vmatpush1.msra.mxu0 0.0
    %1403 = vmatprep.subr.mxu0 0.0
    %1404 = vmatpush1.msra.mxu0 0.0
    %1405 = vmatprep.subr.mxu0 0.0
    %1406 = vmatpush1.msra.mxu0 0.0
    %1407 = vmatprep.subr.mxu0 0.0
    %1408 = vmatpush1.msra.mxu0 0.0
    %1409 = vmatprep.subr.mxu0 0.0
    %1410 = vmatpush1.msra.mxu0 0.0
    %1411 = vmatprep.subr.mxu0 0.0
    %1412 = vmatpush1.msra.mxu0 0.0
    %1413 = vmatprep.subr.mxu0 0.0
    %1414 = vmatpush1.msra.mxu0 0.0
    %1415 = vmatprep.subr.mxu0 0.0
    %1416 = vmatpush1.msra.mxu0 0.0
    %1417 = vmatprep.subr.mxu0 0.0
    %1418 = vmatpush1.msra.mxu0 0.0
    %1419 = vmatprep.subr.mxu0 0.0
    %1420 = vmatpush1.msra.mxu0 0.0
    %1421 = vmatprep.subr.mxu0 0.0
    %1422 = vmatpush1.msra.mxu0 0.0
    %1423 = vmatprep.subr.mxu0 0.0
    %1424 = vmatpush1.msra.mxu0 0.0
    %1425 = vmatprep.subr.mxu0 0.0
    %1426 = vmatpush1.msra.mxu0 0.0
    %1427 = vmatprep.subr.mxu0 0.0
    %1428 = vmatpush1.msra.mxu0 0.0
    %1429 = vmatprep.subr.mxu0 0.0
    %1430 = vmatpush1.msra.mxu0 0.0
    %1431 = vmatprep.subr.mxu0 0.0
    %1432 = vmatpush1.msra.mxu0 0.0
    %1433 = vmatprep.subr.mxu0 0.0
    %1434 = vmatpush1.msra.mxu0 0.0
    %1435 = vmatprep.subr.mxu0 0.0
    %1436 = vmatpush1.msra.mxu0 0.0
    %1437 = vmatprep.subr.mxu0 0.0
    %1438 = vmatpush1.msra.mxu0 0.0
    %1439 = vmatprep.subr.mxu0 0.0
    %1440 = vmatpush1.msra.mxu0 0.0
    %1441 = vmatprep.subr.mxu0 0.0
    %1442 = vmatpush1.msra.mxu0 0.0
    %1443 = vmatprep.subr.mxu0 0.0
    %1444 = vmatpush1.msra.mxu0 0.0
    %1445 = vmatprep.subr.mxu0 0.0
    %1446 = vmatpush1.msra.mxu0 0.0
    %1447 = vmatprep.subr.mxu0 0.0
    %1448 = vmatpush1.msra.mxu0 0.0
    %1449 = vmatprep.subr.mxu0 0.0
    %1450 = vmatpush1.msra.mxu0 0.0
    %1451 = vmatprep.subr.mxu0 0.0
    %1452 = vmatpush1.msra.mxu0 0.0
    %1453 = vmatprep.subr.mxu0 0.0
    %1454 = vmatpush1.msra.mxu0 0.0
    %1455 = vmatprep.subr.mxu0 0.0
    %1456 = vmatpush1.msra.mxu0 0.0
    %1457 = vmatprep.subr.mxu0 0.0
    %1458 = vmatpush1.msra.mxu0 0.0
    %1459 = vmatprep.subr.mxu0 0.0
    %1460 = vmatpush1.msra.mxu0 0.0
    %1461 = vmatprep.subr.mxu0 0.0
    %1462 = vmatpush1.msra.mxu0 0.0
    %1463 = vmatprep.mubr.f32.mxu0 0.0
    %1464 = vmatmul.mubr.f32.gmra.mrb[0].mxu0 %v1397
    %v1465 = vpop.f32.mrb[0].mxu0
    %v1466 = vadd.f32 0.0, %v1465
    %v1467 = vpop.f32.mrb[0].mxu0
    %1468 = vdwg.mxu0
    %v1469 = vmul.f32 %v1466, %v1392
    %1470 = vrot.lane.b32.xlu0 %v953, 104
    %v1471 = vpop.permute.xlu0 %1470
    %1472 = vrot.lane.b32.xlu0 %v974, 72
    %v1473 = vpop.permute.xlu0 %1472
    %v1474 = vsel %vm258, %v1471, 0
    %v1476 = vsel %vm258, %v1473, 0
    %1478 = vmatprep.subr.mxu0 0.0
    %1479 = vmatpush1.xpose.msra.mxu0 %v1476
    %1480 = vmatprep.subr.mxu0 0.0
    %1481 = vmatpush1.xpose.msra.mxu0 0.0
    %1482 = vmatprep.subr.mxu0 0.0
    %1483 = vmatpush1.xpose.msra.mxu0 0.0
    %1484 = vmatprep.subr.mxu0 0.0
    %1485 = vmatpush1.xpose.msra.mxu0 0.0
    %1486 = vmatprep.subr.mxu0 0.0
    %1487 = vmatpush1.xpose.msra.mxu0 0.0
    %1488 = vmatprep.subr.mxu0 0.0
    %1489 = vmatpush1.xpose.msra.mxu0 0.0
    %1490 = vmatprep.subr.mxu0 0.0
    %1491 = vmatpush1.xpose.msra.mxu0 0.0
    %1492 = vmatprep.subr.mxu0 0.0
    %1493 = vmatpush1.xpose.msra.mxu0 0.0
    %1494 = vmatprep.subr.mxu0 0.0
    %1495 = vmatpush1.xpose.msra.mxu0 0.0
    %1496 = vmatprep.subr.mxu0 0.0
    %1497 = vmatpush1.xpose.msra.mxu0 0.0
    %1498 = vmatprep.subr.mxu0 0.0
    %1499 = vmatpush1.xpose.msra.mxu0 0.0
    %1500 = vmatprep.subr.mxu0 0.0
    %1501 = vmatpush1.xpose.msra.mxu0 0.0
    %1502 = vmatprep.subr.mxu0 0.0
    %1503 = vmatpush1.xpose.msra.mxu0 0.0
    %1504 = vmatprep.subr.mxu0 0.0
    %1505 = vmatpush1.xpose.msra.mxu0 0.0
    %1506 = vmatprep.subr.mxu0 0.0
    %1507 = vmatpush1.xpose.msra.mxu0 0.0
    %1508 = vmatprep.subr.mxu0 0.0
    %1509 = vmatpush1.xpose.msra.mxu0 0.0
    %1510 = vmatprep.subr.mxu0 0.0
    %1511 = vmatpush1.xpose.msra.mxu0 0.0
    %1512 = vmatprep.subr.mxu0 0.0
    %1513 = vmatpush1.xpose.msra.mxu0 0.0
    %1514 = vmatprep.subr.mxu0 0.0
    %1515 = vmatpush1.xpose.msra.mxu0 0.0
    %1516 = vmatprep.subr.mxu0 0.0
    %1517 = vmatpush1.xpose.msra.mxu0 0.0
    %1518 = vmatprep.subr.mxu0 0.0
    %1519 = vmatpush1.xpose.msra.mxu0 0.0
    %1520 = vmatprep.subr.mxu0 0.0
    %1521 = vmatpush1.xpose.msra.mxu0 0.0
    %1522 = vmatprep.subr.mxu0 0.0
    %1523 = vmatpush1.xpose.msra.mxu0 0.0
    %1524 = vmatprep.subr.mxu0 0.0
    %1525 = vmatpush1.xpose.msra.mxu0 0.0
    %1526 = vmatprep.subr.mxu0 0.0
    %1527 = vmatpush1.xpose.msra.mxu0 0.0
    %1528 = vmatprep.subr.mxu0 0.0
    %1529 = vmatpush1.xpose.msra.mxu0 0.0
    %1530 = vmatprep.subr.mxu0 0.0
    %1531 = vmatpush1.xpose.msra.mxu0 0.0
    %1532 = vmatprep.subr.mxu0 0.0
    %1533 = vmatpush1.xpose.msra.mxu0 0.0
    %1534 = vmatprep.subr.mxu0 0.0
    %1535 = vmatpush1.xpose.msra.mxu0 0.0
    %1536 = vmatprep.subr.mxu0 0.0
    %1537 = vmatpush1.xpose.msra.mxu0 0.0
    %1538 = vmatprep.subr.mxu0 0.0
    %1539 = vmatpush1.xpose.msra.mxu0 0.0
    %1540 = vmatprep.subr.mxu0 0.0
    %1541 = vmatpush1.xpose.msra.mxu0 0.0
    %1542 = vmatprep.mubr.f32.mxu0 0.0
    %1543 = vmatmul.mubr.f32.gmra.mrb[0].mxu0 %v1474
    %v1544 = vpop.f32.mrb[0].mxu0
    %v1545 = vadd.f32 %v206, %v1544
    %v1546 = vpop.f32.mrb[0].mxu0
    %1547 = vdwg.mxu0
    %v1548 = vsel %vm258, %v1545, -inf
    %1549 = vmax.xlane.f32.xlu0 %v1548
    %v1550 = vpop.xlane.xlu0 %1549
    %v1551 = vsub.f32 %v1545, %v1550
    %v1552 = vmul.f32 %v1551, 1.442695
    %v1553 = vpow.pop %v1552
    %v1554 = vsel %vm258, %v1553, 0.0
    %1555 = vadd.xlane.f32.xlu0 %v1554
    %v1556 = vpop.xlane.xlu0 %1555
    %v1557 = vrcp.pop %v1556
    %1558 = vrot.lane.b32.xlu0 %v187, 40
    %v1559 = vpop.permute.xlu0 %1558
    %v1562 = vsel %vm258, %v1553, 0
    %1564 = vmatprep.subr.mxu0 0.0
    %1565 = vmatpush1.msra.mxu0 %v1559
    %1566 = vmatprep.subr.mxu0 0.0
    %1567 = vmatpush1.msra.mxu0 0.0
    %1568 = vmatprep.subr.mxu0 0.0
    %1569 = vmatpush1.msra.mxu0 0.0
    %1570 = vmatprep.subr.mxu0 0.0
    %1571 = vmatpush1.msra.mxu0 0.0
    %1572 = vmatprep.subr.mxu0 0.0
    %1573 = vmatpush1.msra.mxu0 0.0
    %1574 = vmatprep.subr.mxu0 0.0
    %1575 = vmatpush1.msra.mxu0 0.0
    %1576 = vmatprep.subr.mxu0 0.0
    %1577 = vmatpush1.msra.mxu0 0.0
    %1578 = vmatprep.subr.mxu0 0.0
    %1579 = vmatpush1.msra.mxu0 0.0
    %1580 = vmatprep.subr.mxu0 0.0
    %1581 = vmatpush1.msra.mxu0 0.0
    %1582 = vmatprep.subr.mxu0 0.0
    %1583 = vmatpush1.msra.mxu0 0.0
    %1584 = vmatprep.subr.mxu0 0.0
    %1585 = vmatpush1.msra.mxu0 0.0
    %1586 = vmatprep.subr.mxu0 0.0
    %1587 = vmatpush1.msra.mxu0 0.0
    %1588 = vmatprep.subr.mxu0 0.0
    %1589 = vmatpush1.msra.mxu0 0.0
    %1590 = vmatprep.subr.mxu0 0.0
    %1591 = vmatpush1.msra.mxu0 0.0
    %1592 = vmatprep.subr.mxu0 0.0
    %1593 = vmatpush1.msra.mxu0 0.0
    %1594 = vmatprep.subr.mxu0 0.0
    %1595 = vmatpush1.msra.mxu0 0.0
    %1596 = vmatprep.subr.mxu0 0.0
    %1597 = vmatpush1.msra.mxu0 0.0
    %1598 = vmatprep.subr.mxu0 0.0
    %1599 = vmatpush1.msra.mxu0 0.0
    %1600 = vmatprep.subr.mxu0 0.0
    %1601 = vmatpush1.msra.mxu0 0.0
    %1602 = vmatprep.subr.mxu0 0.0
    %1603 = vmatpush1.msra.mxu0 0.0
    %1604 = vmatprep.subr.mxu0 0.0
    %1605 = vmatpush1.msra.mxu0 0.0
    %1606 = vmatprep.subr.mxu0 0.0
    %1607 = vmatpush1.msra.mxu0 0.0
    %1608 = vmatprep.subr.mxu0 0.0
    %1609 = vmatpush1.msra.mxu0 0.0
    %1610 = vmatprep.subr.mxu0 0.0
    %1611 = vmatpush1.msra.mxu0 0.0
    %1612 = vmatprep.subr.mxu0 0.0
    %1613 = vmatpush1.msra.mxu0 0.0
    %1614 = vmatprep.subr.mxu0 0.0
    %1615 = vmatpush1.msra.mxu0 0.0
    %1616 = vmatprep.subr.mxu0 0.0
    %1617 = vmatpush1.msra.mxu0 0.0
    %1618 = vmatprep.subr.mxu0 0.0
    %1619 = vmatpush1.msra.mxu0 0.0
    %1620 = vmatprep.subr.mxu0 0.0
    %1621 = vmatpush1.msra.mxu0 0.0
    %1622 = vmatprep.subr.mxu0 0.0
    %1623 = vmatpush1.msra.mxu0 0.0
    %1624 = vmatprep.subr.mxu0 0.0
    %1625 = vmatpush1.msra.mxu0 0.0
    %1626 = vmatprep.subr.mxu0 0.0
    %1627 = vmatpush1.msra.mxu0 0.0
    %1628 = vmatprep.mubr.f32.mxu0 0.0
    %1629 = vmatmul.mubr.f32.gmra.mrb[0].mxu0 %v1562
    %v1630 = vpop.f32.mrb[0].mxu0
    %v1631 = vadd.f32 0.0, %v1630
    %v1632 = vpop.f32.mrb[0].mxu0
    %1633 = vdwg.mxu0
    %v1634 = vmul.f32 %v1631, %v1557
    %1636 = vrot.lane.b32.xlu0 %v1304, 8
    %v1637 = vpop.permute.xlu0 %1636
    %1640 = vrot.lane.b32.xlu0 %v1469, 16
    %v1641 = vpop.permute.xlu0 %1640
    %1644 = vrot.lane.b32.xlu0 %v1634, 24
    %v1645 = vpop.permute.xlu0 %1644
    %v1647 = vsel %vm258, %v1139, %v1637
    %v1648 = vsel %vm929, %v1647, %v1641
    %v1649 = vsel %vm931, %v1648, %v1645
    %v1650 = vld [vmem:[%s7] sm:$0xff]
    %v1651 = vld [vmem:[%s7 + $0x8] sm:$0xff]
    %v1652 = vld [vmem:[%s7 + $0x10] sm:$0xff]
    %v1653 = vld [vmem:[%s7 + $0x18] sm:$0xff]
    %v1654 = vld [vmem:[%s8] sm:$0x1]
    %v1656 = vlaneseq
    %v1657 = vshrl.u32 %v1656, 7
    %v1658 = vsub.s32 0, %v1657
    %v1659 = vrot.slane %v1654, %v1658
    %v1662 = vsel %vm108, %v932, 0
    %v1665 = vsel %vm108, %v1649, 0
    %1667 = vmatprep.subr.mxu0 0.0
    %1668 = vmatpush1.msra.mxu0 %v1650
    %1669 = vmatprep.subr.mxu0 0.0
    %1670 = vmatpush1.msra.mxu0 %v1651
    %1671 = vmatprep.subr.mxu0 0.0
    %1672 = vmatpush1.msra.mxu0 %v1652
    %1673 = vmatprep.subr.mxu0 0.0
    %1674 = vmatpush1.msra.mxu0 %v1653
    %1675 = vmatprep.subr.mxu0 0.0
    %1676 = vmatpush1.msra.mxu0 0.0
    %1677 = vmatprep.subr.mxu0 0.0
    %1678 = vmatpush1.msra.mxu0 0.0
    %1679 = vmatprep.subr.mxu0 0.0
    %1680 = vmatpush1.msra.mxu0 0.0
    %1681 = vmatprep.subr.mxu0 0.0
    %1682 = vmatpush1.msra.mxu0 0.0
    %1683 = vmatprep.subr.mxu0 0.0
    %1684 = vmatpush1.msra.mxu0 0.0
    %1685 = vmatprep.subr.mxu0 0.0
    %1686 = vmatpush1.msra.mxu0 0.0
    %1687 = vmatprep.subr.mxu0 0.0
    %1688 = vmatpush1.msra.mxu0 0.0
    %1689 = vmatprep.subr.mxu0 0.0
    %1690 = vmatpush1.msra.mxu0 0.0
    %1691 = vmatprep.subr.mxu0 0.0
    %1692 = vmatpush1.msra.mxu0 0.0
    %1693 = vmatprep.subr.mxu0 0.0
    %1694 = vmatpush1.msra.mxu0 0.0
    %1695 = vmatprep.subr.mxu0 0.0
    %1696 = vmatpush1.msra.mxu0 0.0
    %1697 = vmatprep.subr.mxu0 0.0
    %1698 = vmatpush1.msra.mxu0 0.0
    %1699 = vmatprep.subr.mxu0 0.0
    %1700 = vmatpush1.msra.mxu0 0.0
    %1701 = vmatprep.subr.mxu0 0.0
    %1702 = vmatpush1.msra.mxu0 0.0
    %1703 = vmatprep.subr.mxu0 0.0
    %1704 = vmatpush1.msra.mxu0 0.0
    %1705 = vmatprep.subr.mxu0 0.0
    %1706 = vmatpush1.msra.mxu0 0.0
    %1707 = vmatprep.subr.mxu0 0.0
    %1708 = vmatpush1.msra.mxu0 0.0
    %1709 = vmatprep.subr.mxu0 0.0
    %1710 = vmatpush1.msra.mxu0 0.0
    %1711 = vmatprep.subr.mxu0 0.0
    %1712 = vmatpush1.msra.mxu0 0.0
    %1713 = vmatprep.subr.mxu0 0.0
    %1714 = vmatpush1.msra.mxu0 0.0
    %1715 = vmatprep.subr.mxu0 0.0
    %1716 = vmatpush1.msra.mxu0 0.0
    %1717 = vmatprep.subr.mxu0 0.0
    %1718 = vmatpush1.msra.mxu0 0.0
    %1719 = vmatprep.subr.mxu0 0.0
    %1720 = vmatpush1.msra.mxu0 0.0
    %1721 = vmatprep.subr.mxu0 0.0
    %1722 = vmatpush1.msra.mxu0 0.0
    %1723 = vmatprep.subr.mxu0 0.0
    %1724 = vmatpush1.msra.mxu0 0.0
    %1725 = vmatprep.subr.mxu0 0.0
    %1726 = vmatpush1.msra.mxu0 0.0
    %1727 = vmatprep.subr.mxu0 0.0
    %1728 = vmatpush1.msra.mxu0 0.0
    %1729 = vmatprep.subr.mxu0 0.0
    %1730 = vmatpush1.msra.mxu0 0.0
    %1731 = vmatprep.mubr.f32.mxu0 0.0
    %1732 = vmatmul.mubr.f32.gmra.mrb[0].mxu0 %v1662
    %v1733 = vpop.f32.mrb[0].mxu0
    %v1734 = vadd.f32 %v1659, %v1733
    %v1735 = vpop.f32.mrb[0].mxu0
    %1736 = vmatprep.mubr.f32.mxu0 0.0
    %1737 = vmatmul.mubr.f32.gmra.mrb[0].mxu0 %v1665
    %v1738 = vpop.f32.mrb[0].mxu0
    %v1739 = vadd.f32 %v1659, %v1738
    %v1740 = vpop.f32.mrb[0].mxu0
    %1741 = vdwg.mxu0
    %1742 = vst [vmem:[#allocation11] sm:$0xff] %v1734
    %1743 = vst [vmem:[#allocation11 + $0x8] sm:$0xff] %v1739
    // Predicated region
    $region58: #{tpu_custom_call.1} parent=1 // pred_check
      _
    $region59: #{tpu_custom_call.1} parent=1 // pred_check_branch
      %1745 = sbr.rel (0) target = $region61
    $region60: #{tpu_custom_call.1} parent=1 // pred_region
      %s1747 = ssub.s32 256, 256
      %1748 = vsyncadd [#allocation4], %s1747
      %s1749 = sshll.u32 [#allocation11], 4
      %s1750 = int_to_ptr.vmem [resolvable:$true] %s1749
      %1755 = dma.vmem_to_hbm [thread:$0]  %s1750, 256, %s9, [#allocation4], 128, 128, 8
    $region61: #{tpu_custom_call.1} parent=1 // pred_fallthru
      _
    // Predicated region
    $region62: #{tpu_custom_call.1} parent=1 // pred_check
      _
    $region63: #{tpu_custom_call.1} parent=1 // pred_check_branch
      %1757 = sbr.rel (0) target = $region65
    $region64: #{tpu_custom_call.1} parent=1 // pred_region
      %1758 = dma.done [#allocation4], 256
    $region65: #{tpu_custom_call.1} parent=1 // pred_fallthru
      _
    %1759 = vsyncpa [#allocation3], 1
    %1760 = vsyncpa [#allocation6], 1
    %1761 = vsyncpa [#allocation9], 1
    %1762 = vsyncpa [#allocation4], 1

</llo_original>
